<compile_context>
chip_gen: v6e
topology: v6e:2x2x1
jax: 0.10.0
libtpu: 0.0.40
codegen_flags: <defaults>
</compile_context>

<pallas_src>
import functools

import jax
import jax.numpy as jnp
import numpy as np
from jax import lax
from jax.experimental import pallas as pl
from jax.experimental.pallas import tpu as pltpu


def _round_up(x, m):
    return ((x + m - 1) // m) * m


# ----------------------------- Pallas kernel --------------------------------
def lstm_kernel(steps_ref,    # SMEM (nt,)   valid step count per time block
                emb_ref,      # (ts, tb, Hp) bf16 time-block of embedded inputs
                bias_ref,     # (1, 4Hp)     f32  b_ih + b_hh, packed [i|f|o|g]
                fcb_ref,      # (1, Ep)      f32  fc bias (padded)
                wih_hbm,      # (Hp, 4Hp)    bf16 W_ih^T in HBM (ANY)
                whh_hbm,      # (Hp, 4Hp)    bf16 W_hh^T in HBM (ANY)
                fcw_hbm,      # (Hp, Ep)     bf16 folded fc weight in HBM (ANY)
                out_ref,      # (tb, Ep)     f32  output block
                h_scr,        # (tb, Hp)     f32  hidden state
                c_scr,        # (tb, Hp)     f32  cell state
                gates_scr,    # (ts, tb, 4Hp) f32 hoisted input projection
                wih_scr,      # (Hp, 4Hp)    bf16 resident W_ih^T
                whh_scr,      # (Hp, 4Hp)    bf16 resident W_hh^T
                fcw_scr,      # (Hp, Ep)     bf16 resident fc weight
                dma_sem,      # DMA sems (3,)
                *, ts, hp, unroll):
    t_id = pl.program_id(1)
    tb = h_scr.shape[0]
    H4 = 4 * hp

    # New batch block: stage the loop-invariant weights single-buffered into
    # VMEM and reset the recurrent state.  (Scratch persists across the time
    # grid axis, so this happens once per batch block.)
    @pl.when(t_id == 0)
    def _():
        cps = (pltpu.make_async_copy(wih_hbm, wih_scr, dma_sem.at[0]),
               pltpu.make_async_copy(whh_hbm, whh_scr, dma_sem.at[1]),
               pltpu.make_async_copy(fcw_hbm, fcw_scr, dma_sem.at[2]))
        for cp in cps:
            cp.start()
        for cp in cps:
            cp.wait()
        h_scr[...] = jnp.zeros_like(h_scr)
        c_scr[...] = jnp.zeros_like(c_scr)

    # Hoisted input projection: one wide bf16 MXU matmul per time block with
    # f32 accumulation; bias folded in here so the serial loop only does
    # h @ W_hh.  Result parked in VMEM scratch and sliced per step.
    x_blk = emb_ref[...]                                       # (ts, tb, Hp) bf16
    gx = (jnp.dot(x_blk.reshape(ts * tb, hp), wih_scr[...],
                  preferred_element_type=jnp.float32)
          + bias_ref[...])                                     # (ts*tb, 4Hp) f32
    gates_scr[...] = gx.reshape(ts, tb, H4)

    n_valid = steps_ref[t_id]
    whh = whh_scr[...]

    def step(t, carry):
        h, c = carry
        gates = gates_scr[t] + jnp.dot(h.astype(jnp.bfloat16), whh,
                                       preferred_element_type=jnp.float32)
        # Gates packed [i | f | o | g]: one wide sigmoid + one tanh (f32 VPU/EUP).
        sig = jax.nn.sigmoid(gates[:, :3 * hp])
        g_g = jnp.tanh(gates[:, 3 * hp:])
        i_g = sig[:, 0 * hp:1 * hp]
        f_g = sig[:, 1 * hp:2 * hp]
        o_g = sig[:, 2 * hp:3 * hp]
        c_new = f_g * c + i_g * g_g
        h_new = o_g * jnp.tanh(c_new)
        # Mask out padded time steps (a zero-input step still mutates h/c).
        keep = t < n_valid
        return jnp.where(keep, h_new, h), jnp.where(keep, c_new, c)

    h, c = lax.fori_loop(0, ts, step, (h_scr[...], c_scr[...]), unroll=unroll)
    h_scr[...] = h
    c_scr[...] = c

    # Last time block for this batch block: emit output.
    # num_layers == 1 => attention is an identity; fc already folded.
    @pl.when(t_id == pl.num_programs(1) - 1)
    def _():
        out_ref[...] = (jnp.dot(h_scr[...].astype(jnp.bfloat16), fcw_scr[...],
                                preferred_element_type=jnp.float32)
                        + fcb_ref[...]).astype(out_ref.dtype)


# ------------------------------ wrapper --------------------------------------
def lstm_model_forward(X, kp, *, target_time_block=32, max_batch_block=128):
    emb_table = kp["embedding"]               # (V, Hp) bf16
    Hp = kp["hidden_pad"]
    Ep = kp["encoding_pad"]
    E = kp["encoding_dim"]
    B, S = X.shape

    # Embedding gather directly into time-major bf16 layout — no separate f32
    # cast/transpose materialization of the activations.
    emb_t = jnp.take(emb_table, X.T, axis=0)                  # (S, B, Hp) bf16

    # Time blocking: pad S to a multiple of ts; valid step counts go to SMEM
    # via scalar prefetch and bound the recurrence inside the kernel.
    Bp = _round_up(B, 8)
    ts = min(target_time_block, S)
    Sp = _round_up(S, ts)
    nt = Sp // ts
    if (Sp - S) or (Bp - B):
        emb_t = jnp.pad(emb_t, ((0, Sp - S), (0, Bp - B), (0, 0)))
    steps = jnp.asarray(
        np.minimum(ts, np.maximum(0, S - ts * np.arange(nt))).astype(np.int32))

    # Batch tiling: prefer >= 2 batch blocks so the "parallel" axis can shard
    # across both TensorCores on v7x (no effect on v5e/v6e).
    divs = [t for t in range(8, Bp + 1, 8) if Bp % t == 0 and t <= max_batch_block]
    multi = [t for t in divs if Bp // t >= 2]
    tb = max(multi) if multi else max(divs)
    nb = Bp // tb

    unroll = True if ts <= 8 else 8
    kernel = functools.partial(lstm_kernel, ts=ts, hp=Hp, unroll=unroll)

    # Explicit VMEM budget (scoped default is well below physical on v5e/v6e).
    f32, bf16 = 4, 2
    vmem_est = (2 * ts * tb * Hp * bf16            # emb block (double-buffered)
                + ts * tb * 4 * Hp * f32           # gates scratch
                + 2 * tb * Hp * f32                # h, c
                + 2 * (Hp * 4 * Hp) * bf16         # W_ih, W_hh (single-buffered)
                + Hp * Ep * bf16                   # fc_w (single-buffered)
                + 2 * tb * Ep * f32                # out block
                + 4 * (4 * Hp + Ep) * f32)         # biases
    vmem_limit = int(min(100 * 2**20, max(32 * 2**20, 2 * vmem_est)))

    out = pl.pallas_call(
        kernel,
        out_shape=jax.ShapeDtypeStruct((Bp, Ep), jnp.float32),
        grid_spec=pltpu.PrefetchScalarGridSpec(
            num_scalar_prefetch=1,
            grid=(nb, nt),
            in_specs=[
                pl.BlockSpec((ts, tb, Hp), lambda b, t, ss: (t, b, 0)),
                pl.BlockSpec((1, 4 * Hp), lambda b, t, ss: (0, 0)),
                pl.BlockSpec((1, Ep), lambda b, t, ss: (0, 0)),
                pl.BlockSpec(memory_space=pl.ANY),   # W_ih^T (staged once/block)
                pl.BlockSpec(memory_space=pl.ANY),   # W_hh^T
                pl.BlockSpec(memory_space=pl.ANY),   # folded fc weight
            ],
            out_specs=pl.BlockSpec((tb, Ep), lambda b, t, ss: (b, 0)),
            scratch_shapes=[
                pltpu.VMEM((tb, Hp), jnp.float32),           # h
                pltpu.VMEM((tb, Hp), jnp.float32),           # c
                pltpu.VMEM((ts, tb, 4 * Hp), jnp.float32),   # gates_x
                pltpu.VMEM((Hp, 4 * Hp), jnp.bfloat16),      # W_ih resident
                pltpu.VMEM((Hp, 4 * Hp), jnp.bfloat16),      # W_hh resident
                pltpu.VMEM((Hp, Ep), jnp.bfloat16),          # fc_w resident
                pltpu.SemaphoreType.DMA((3,)),
            ],
        ),
        compiler_params=pltpu.CompilerParams(
            dimension_semantics=("parallel", "arbitrary"),
            vmem_limit_bytes=vmem_limit),
    )(steps, emb_t, kp["b_gates"], kp["fc_b"],
      kp["w_ih_t"], kp["w_hh_t"], kp["fc_w_fold"])

    return out[:B, :E]


# --------------------------- param construction ------------------------------
def make_params(key, vocab_size, hidden_dim, encoding_dim):
    """PyTorch-convention parameters: gate order [i, f, g, o], fc is (E, 2H)."""
    H, E = hidden_dim, encoding_dim
    ks = jax.random.split(key, 8)
    scale = 1.0 / np.sqrt(H)

    emb = jax.random.normal(ks[0], (vocab_size, H), jnp.float32) * 0.1
    emb = emb.at[vocab_size - 1].set(0.0)     # padding_idx = vocab_size - 1

    w_ih = jax.random.uniform(ks[1], (4 * H, H), jnp.float32, -scale, scale)
    w_hh = jax.random.uniform(ks[2], (4 * H, H), jnp.float32, -scale, scale)
    b_ih = jax.random.uniform(ks[3], (4 * H,), jnp.float32, -scale, scale)
    b_hh = jax.random.uniform(ks[4], (4 * H,), jnp.float32, -scale, scale)

    attn_w = jax.random.uniform(ks[5], (1, H), jnp.float32, -scale, scale)

    fc_scale = 1.0 / np.sqrt(2 * H)
    fc_w = jax.random.uniform(ks[6], (E, 2 * H), jnp.float32, -fc_scale, fc_scale)
    fc_b = jax.random.uniform(ks[7], (E,), jnp.float32, -fc_scale, fc_scale)

    return {"embedding": emb, "w_ih": w_ih, "w_hh": w_hh,
            "b_ih": b_ih, "b_hh": b_hh, "attn_w": attn_w,
            "fc_w": fc_w, "fc_b": fc_b}


def prepare_kernel_params(params):
    """Repack PyTorch-style params into the kernel layout:
       - gate order [i,f,g,o] -> [i,f,o,g], weights transposed to (H, 4H)
       - biases summed once
       - H padded (per gate) to a 128-lane multiple, E padded to 128 lanes
       - attention identity + concat folded into a single (Hp, Ep) fc weight
       - MXU operands (embedding, W_ih, W_hh, fc_w) stored in bf16."""
    H = params["embedding"].shape[1]
    E = params["fc_b"].shape[0]
    Hp = _round_up(H, 128)
    Ep = _round_up(E, 128)

    perm = np.concatenate([np.arange(0, 2 * H),        # i, f
                           np.arange(3 * H, 4 * H),    # o
                           np.arange(2 * H, 3 * H)])   # g

    def pad_gate_cols(w):   # (..., 4H) -> (..., 4Hp), zero-pad each gate block
        parts = [w[..., k * H:(k + 1) * H] for k in range(4)]
        parts = [jnp.pad(p, [(0, 0)] * (p.ndim - 1) + [(0, Hp - H)]) for p in parts]
        return jnp.concatenate(parts, axis=-1)

    w_ih_t = pad_gate_cols(params["w_ih"][perm].T)     # (H, 4Hp)
    w_hh_t = pad_gate_cols(params["w_hh"][perm].T)
    w_ih_t = jnp.pad(w_ih_t, ((0, Hp - H), (0, 0)))    # (Hp, 4Hp)
    w_hh_t = jnp.pad(w_hh_t, ((0, Hp - H), (0, 0)))
    b_gates = pad_gate_cols(
        (params["b_ih"] + params["b_hh"])[perm].reshape(1, 4 * H))   # (1, 4Hp)

    # num_layers == 1: context == h_final, so cat([h, context]) @ fc_w.T
    #                  == h @ (fc_w_t[:H] + fc_w_t[H:]).
    # TODO(synk): gate this fold on num_layers > 1.
    fc_w_t = params["fc_w"].T                          # (2H, E)
    fc_w_fold = fc_w_t[:H] + fc_w_t[H:]                # (H, E)
    fc_w_fold = jnp.pad(fc_w_fold, ((0, Hp - H), (0, Ep - E)))
    fc_b = jnp.pad(params["fc_b"], (0, Ep - E)).reshape(1, Ep)

    emb = jnp.pad(params["embedding"], ((0, 0), (0, Hp - H)))

    return {"embedding": emb.astype(jnp.bfloat16),
            "w_ih_t": w_ih_t.astype(jnp.bfloat16),
            "w_hh_t": w_hh_t.astype(jnp.bfloat16),
            "b_gates": b_gates.astype(jnp.float32),
            "fc_w_fold": fc_w_fold.astype(jnp.bfloat16),
            "fc_b": fc_b.astype(jnp.float32),
            "encoding_dim": E, "hidden_pad": Hp, "encoding_pad": Ep}


# ----------------------------- JAX reference ---------------------------------
def reference_forward(X, params):
    """Mirrors the PyTorch module exactly (incl. the attention path), in f32."""
    emb = jnp.take(params["embedding"], X, axis=0)     # (B, S, H)
    B, S, H = emb.shape
    w_ih, w_hh = params["w_ih"], params["w_hh"]
    b = params["b_ih"] + params["b_hh"]
    h = jnp.zeros((B, H), jnp.float32)
    c = jnp.zeros((B, H), jnp.float32)
    for t in range(S):
        gates = emb[:, t, :] @ w_ih.T + h @ w_hh.T + b
        i_g = jax.nn.sigmoid(gates[:, 0 * H:1 * H])
        f_g = jax.nn.sigmoid(gates[:, 1 * H:2 * H])
        g_g = jnp.tanh(gates[:, 2 * H:3 * H])
        o_g = jax.nn.sigmoid(gates[:, 3 * H:4 * H])
        c = f_g * c + i_g * g_g
        h = o_g * jnp.tanh(c)
    hidden_stack = h[:, None, :]                       # (B, 1, H)
    scores = jnp.einsum("bld,d->bl", hidden_stack, params["attn_w"][0])
    weights = jax.nn.softmax(scores, axis=1)
    context = jnp.sum(weights[..., None] * hidden_stack, axis=1)
    cat = jnp.concatenate([h, context], axis=1)
    return cat @ params["fc_w"].T + params["fc_b"]


# --------------------------------- main ---------------------------------------
if __name__ == "__main__":
    vocab_size = 50
    hidden_dim = 32
    encoding_dim = 16
    batch = 2
    seq = 8

    key = jax.random.PRNGKey(0)
    k_param, k_x = jax.random.split(key)
    params = make_params(k_param, vocab_size, hidden_dim, encoding_dim)
    kparams = prepare_kernel_params(params)
    X = jax.random.randint(k_x, (batch, seq), 0, vocab_size, dtype=jnp.int32)

    out = lstm_model_forward(X, kparams)
    out = jax.block_until_ready(out)

    ref = reference_forward(X, params)
    # bf16 MXU operands with f32 accumulation: slightly looser tolerance.
    np.testing.assert_allclose(np.asarray(out), np.asarray(ref),
                               rtol=2e-2, atol=2e-2)
    assert out.shape == (batch, encoding_dim)
    print("KERNEL_OK")
</pallas_src>

<mosaic_0001>
module attributes {stable_mosaic.version = 11 : i64} {
  func.func @lstm_kernel(%arg0: i32, %arg1: i32, %arg2: memref<1xi32, #tpu.memory_space<smem>>, %arg3: memref<8x8x128xbf16, #tpu.memory_space<vmem>>, %arg4: memref<1x512xf32, #tpu.memory_space<vmem>>, %arg5: memref<1x128xf32, #tpu.memory_space<vmem>>, %arg6: memref<128x512xbf16, #tpu.memory_space<any>>, %arg7: memref<128x512xbf16, #tpu.memory_space<any>>, %arg8: memref<128x128xbf16, #tpu.memory_space<any>>, %arg9: memref<8x128xf32, #tpu.memory_space<vmem>>, %arg10: memref<8x128xf32, #tpu.memory_space<vmem>>, %arg11: memref<8x128xf32, #tpu.memory_space<vmem>>, %arg12: memref<8x8x512xf32, #tpu.memory_space<vmem>>, %arg13: memref<128x512xbf16, #tpu.memory_space<vmem>>, %arg14: memref<128x512xbf16, #tpu.memory_space<vmem>>, %arg15: memref<128x128xbf16, #tpu.memory_space<vmem>>, %arg16: memref<3x!tpu.dma_semaphore, #tpu.memory_space<semaphore_mem>>) attributes {dimension_semantics = [#tpu.dimension_semantics<parallel>, #tpu.dimension_semantics<arbitrary>], iteration_bounds = array<i64: 1, 1>, scalar_prefetch = 1 : i64, scratch_operands = 7 : i64, tpu.core_type = #tpu.core_type<tc>, window_params = [{transform_indices = @transform_0, window_bounds = array<i64: 8, 8, 128>}, {pipeline_mode = #tpu.pipeline_mode<synchronous>, transform_indices = @transform_1, window_bounds = array<i64: 1, 512>}, {pipeline_mode = #tpu.pipeline_mode<synchronous>, transform_indices = @transform_2, window_bounds = array<i64: 1, 128>}, {}, {}, {}, {transform_indices = @transform_6, window_bounds = array<i64: 8, 128>}]} {
    %c0_i32 = arith.constant 0 : i32
    %0 = arith.cmpi eq, %arg1, %c0_i32 : i32
    %1 = arith.extui %0 : i1 to i32
    %c0_i32_0 = arith.constant 0 : i32
    %2 = arith.cmpi ne, %1, %c0_i32_0 : i32
    scf.if %2 {
      %c0_i32_55 = arith.constant 0 : i32
      %222 = tpu.memref_slice %arg16[%c0_i32_55] : memref<3x!tpu.dma_semaphore, #tpu.memory_space<semaphore_mem>> -> memref<1x!tpu.dma_semaphore, #tpu.memory_space<semaphore_mem>>
      %223 = tpu.memref_squeeze %222 : memref<1x!tpu.dma_semaphore, #tpu.memory_space<semaphore_mem>> -> memref<!tpu.dma_semaphore, #tpu.memory_space<semaphore_mem>>
      tpu.enqueue_dma source(%arg6 : memref<128x512xbf16, #tpu.memory_space<any>>) target(%arg13 : memref<128x512xbf16, #tpu.memory_space<vmem>>) target_semaphore(%223 : memref<!tpu.dma_semaphore, #tpu.memory_space<semaphore_mem>>)
      %c1_i32_56 = arith.constant 1 : i32
      %224 = tpu.memref_slice %arg16[%c1_i32_56] : memref<3x!tpu.dma_semaphore, #tpu.memory_space<semaphore_mem>> -> memref<1x!tpu.dma_semaphore, #tpu.memory_space<semaphore_mem>>
      %225 = tpu.memref_squeeze %224 : memref<1x!tpu.dma_semaphore, #tpu.memory_space<semaphore_mem>> -> memref<!tpu.dma_semaphore, #tpu.memory_space<semaphore_mem>>
      tpu.enqueue_dma source(%arg7 : memref<128x512xbf16, #tpu.memory_space<any>>) target(%arg14 : memref<128x512xbf16, #tpu.memory_space<vmem>>) target_semaphore(%225 : memref<!tpu.dma_semaphore, #tpu.memory_space<semaphore_mem>>)
      %c2_i32_57 = arith.constant 2 : i32
      %226 = tpu.memref_slice %arg16[%c2_i32_57] : memref<3x!tpu.dma_semaphore, #tpu.memory_space<semaphore_mem>> -> memref<1x!tpu.dma_semaphore, #tpu.memory_space<semaphore_mem>>
      %227 = tpu.memref_squeeze %226 : memref<1x!tpu.dma_semaphore, #tpu.memory_space<semaphore_mem>> -> memref<!tpu.dma_semaphore, #tpu.memory_space<semaphore_mem>>
      tpu.enqueue_dma source(%arg8 : memref<128x128xbf16, #tpu.memory_space<any>>) target(%arg15 : memref<128x128xbf16, #tpu.memory_space<vmem>>) target_semaphore(%227 : memref<!tpu.dma_semaphore, #tpu.memory_space<semaphore_mem>>)
      %c0_i32_58 = arith.constant 0 : i32
      %228 = tpu.memref_slice %arg16[%c0_i32_58] : memref<3x!tpu.dma_semaphore, #tpu.memory_space<semaphore_mem>> -> memref<1x!tpu.dma_semaphore, #tpu.memory_space<semaphore_mem>>
      %229 = tpu.memref_squeeze %228 : memref<1x!tpu.dma_semaphore, #tpu.memory_space<semaphore_mem>> -> memref<!tpu.dma_semaphore, #tpu.memory_space<semaphore_mem>>
      tpu.wait_dma2 semaphore(%229 : memref<!tpu.dma_semaphore, #tpu.memory_space<semaphore_mem>>) src(%arg6 : memref<128x512xbf16, #tpu.memory_space<any>>) dst(%arg13 : memref<128x512xbf16, #tpu.memory_space<vmem>>)
      %c1_i32_59 = arith.constant 1 : i32
      %230 = tpu.memref_slice %arg16[%c1_i32_59] : memref<3x!tpu.dma_semaphore, #tpu.memory_space<semaphore_mem>> -> memref<1x!tpu.dma_semaphore, #tpu.memory_space<semaphore_mem>>
      %231 = tpu.memref_squeeze %230 : memref<1x!tpu.dma_semaphore, #tpu.memory_space<semaphore_mem>> -> memref<!tpu.dma_semaphore, #tpu.memory_space<semaphore_mem>>
      tpu.wait_dma2 semaphore(%231 : memref<!tpu.dma_semaphore, #tpu.memory_space<semaphore_mem>>) src(%arg7 : memref<128x512xbf16, #tpu.memory_space<any>>) dst(%arg14 : memref<128x512xbf16, #tpu.memory_space<vmem>>)
      %c2_i32_60 = arith.constant 2 : i32
      %232 = tpu.memref_slice %arg16[%c2_i32_60] : memref<3x!tpu.dma_semaphore, #tpu.memory_space<semaphore_mem>> -> memref<1x!tpu.dma_semaphore, #tpu.memory_space<semaphore_mem>>
      %233 = tpu.memref_squeeze %232 : memref<1x!tpu.dma_semaphore, #tpu.memory_space<semaphore_mem>> -> memref<!tpu.dma_semaphore, #tpu.memory_space<semaphore_mem>>
      tpu.wait_dma2 semaphore(%233 : memref<!tpu.dma_semaphore, #tpu.memory_space<semaphore_mem>>) src(%arg8 : memref<128x128xbf16, #tpu.memory_space<any>>) dst(%arg15 : memref<128x128xbf16, #tpu.memory_space<vmem>>)
      %cst_61 = arith.constant 0.000000e+00 : f32
      %234 = vector.broadcast %cst_61 : f32 to vector<8x128xf32>
      %c0_62 = arith.constant 0 : index
      %c0_63 = arith.constant 0 : index
      %235 = vector.load %arg10[%c0_62, %c0_63] : memref<8x128xf32, #tpu.memory_space<vmem>>, vector<8x128xf32>
      tpu.vector_store %arg10[%c0_62, %c0_63], %234 {strides = array<i32>} : memref<8x128xf32, #tpu.memory_space<vmem>>, vector<8x128xf32>,
      %cst_64 = arith.constant 0.000000e+00 : f32
      %236 = vector.broadcast %cst_64 : f32 to vector<8x128xf32>
      %c0_65 = arith.constant 0 : index
      %c0_66 = arith.constant 0 : index
      %237 = vector.load %arg11[%c0_65, %c0_66] : memref<8x128xf32, #tpu.memory_space<vmem>>, vector<8x128xf32>
      tpu.vector_store %arg11[%c0_65, %c0_66], %236 {strides = array<i32>} : memref<8x128xf32, #tpu.memory_space<vmem>>, vector<8x128xf32>,
    } else {
    }
    %c0 = arith.constant 0 : index
    %c0_1 = arith.constant 0 : index
    %c0_2 = arith.constant 0 : index
    %3 = vector.load %arg3[%c0, %c0_1, %c0_2] : memref<8x8x128xbf16, #tpu.memory_space<vmem>>, vector<8x8x128xbf16>
    %4 = vector.shape_cast %3 : vector<8x8x128xbf16> to vector<64x128xbf16>
    %c0_3 = arith.constant 0 : index
    %c0_4 = arith.constant 0 : index
    %5 = vector.load %arg13[%c0_3, %c0_4] : memref<128x512xbf16, #tpu.memory_space<vmem>>, vector<128x512xbf16>
    %cst = arith.constant dense<0.000000e+00> : vector<64x512xf32>
    %6 = tpu.matmul %4, %5, %cst {dimension_numbers = #tpu.dot_dimension_numbers<[1], [0], [0], [1], [0, 0, 1, 1], [], []>} : vector<64x128xbf16>, vector<128x512xbf16>, vector<64x512xf32> -> vector<64x512xf32>
    %c0_5 = arith.constant 0 : index
    %c0_6 = arith.constant 0 : index
    %7 = vector.load %arg4[%c0_5, %c0_6] : memref<1x512xf32, #tpu.memory_space<vmem>>, vector<1x512xf32>
    %8 = vector.broadcast %7 : vector<1x512xf32> to vector<64x512xf32>
    %9 = arith.addf %6, %8 : vector<64x512xf32>
    %10 = vector.shape_cast %9 : vector<64x512xf32> to vector<8x8x512xf32>
    %c0_7 = arith.constant 0 : index
    %c0_8 = arith.constant 0 : index
    %c0_9 = arith.constant 0 : index
    %11 = vector.load %arg12[%c0_7, %c0_8, %c0_9] : memref<8x8x512xf32, #tpu.memory_space<vmem>>, vector<8x8x512xf32>
    tpu.vector_store %arg12[%c0_7, %c0_8, %c0_9], %10 {strides = array<i32>} : memref<8x8x512xf32, #tpu.memory_space<vmem>>, vector<8x8x512xf32>,
    %12 = arith.index_cast %arg1 : i32 to index
    %13 = memref.load %arg2[%12] : memref<1xi32, #tpu.memory_space<smem>>
    %c0_10 = arith.constant 0 : index
    %c0_11 = arith.constant 0 : index
    %14 = vector.load %arg14[%c0_10, %c0_11] : memref<128x512xbf16, #tpu.memory_space<vmem>>, vector<128x512xbf16>
    %c0_12 = arith.constant 0 : index
    %c0_13 = arith.constant 0 : index
    %15 = vector.load %arg10[%c0_12, %c0_13] : memref<8x128xf32, #tpu.memory_space<vmem>>, vector<8x128xf32>
    %c0_14 = arith.constant 0 : index
    %c0_15 = arith.constant 0 : index
    %16 = vector.load %arg11[%c0_14, %c0_15] : memref<8x128xf32, #tpu.memory_space<vmem>>, vector<8x128xf32>
    %c0_i32_16 = arith.constant 0 : i32
    %17 = arith.index_cast %c0_i32_16 : i32 to index
    %c0_17 = arith.constant 0 : index
    %c0_18 = arith.constant 0 : index
    %18 = vector.load %arg12[%17, %c0_17, %c0_18] : memref<8x8x512xf32, #tpu.memory_space<vmem>>, vector<1x8x512xf32>
    %19 = vector.shape_cast %18 : vector<1x8x512xf32> to vector<8x512xf32>
    %20 = arith.truncf %15 : vector<8x128xf32> to vector<8x128xbf16>
    %cst_19 = arith.constant dense<0.000000e+00> : vector<8x512xf32>
    %21 = tpu.matmul %20, %14, %cst_19 {dimension_numbers = #tpu.dot_dimension_numbers<[1], [0], [0], [1], [0, 0, 1, 1], [], []>} : vector<8x128xbf16>, vector<128x512xbf16>, vector<8x512xf32> -> vector<8x512xf32>
    %22 = arith.addf %19, %21 : vector<8x512xf32>
    %23 = vector.extract_strided_slice %22 {offsets = [0, 0], sizes = [8, 384], strides = [1, 1]} : vector<8x512xf32> to vector<8x384xf32>
    %24 = arith.negf %23 : vector<8x384xf32>
    %25 = math.exp %24 : vector<8x384xf32>
    %cst_20 = arith.constant 1.000000e+00 : f32
    %26 = vector.broadcast %cst_20 : f32 to vector<8x384xf32>
    %27 = arith.addf %26, %25 : vector<8x384xf32>
    %28 = arith.divf %26, %27 : vector<8x384xf32>
    %29 = vector.extract_strided_slice %22 {offsets = [0, 384], sizes = [8, 128], strides = [1, 1]} : vector<8x512xf32> to vector<8x128xf32>
    %30 = math.tanh %29 : vector<8x128xf32>
    %31 = vector.extract_strided_slice %28 {offsets = [0, 0], sizes = [8, 128], strides = [1, 1]} : vector<8x384xf32> to vector<8x128xf32>
    %32 = vector.extract_strided_slice %28 {offsets = [0, 128], sizes = [8, 128], strides = [1, 1]} : vector<8x384xf32> to vector<8x128xf32>
    %33 = vector.extract_strided_slice %28 {offsets = [0, 256], sizes = [8, 128], strides = [1, 1]} : vector<8x384xf32> to vector<8x128xf32>
    %34 = arith.mulf %32, %16 : vector<8x128xf32>
    %35 = arith.mulf %31, %30 : vector<8x128xf32>
    %36 = arith.addf %34, %35 : vector<8x128xf32>
    %37 = math.tanh %36 : vector<8x128xf32>
    %38 = arith.mulf %33, %37 : vector<8x128xf32>
    %39 = arith.cmpi slt, %c0_i32_16, %13 : i32
    %40 = arith.select %39, %38, %15 : vector<8x128xf32>
    %41 = arith.select %39, %36, %16 : vector<8x128xf32>
    %c1_i32 = arith.constant 1 : i32
    %42 = arith.index_cast %c1_i32 : i32 to index
    %c0_21 = arith.constant 0 : index
    %c0_22 = arith.constant 0 : index
    %43 = vector.load %arg12[%42, %c0_21, %c0_22] : memref<8x8x512xf32, #tpu.memory_space<vmem>>, vector<1x8x512xf32>
    %44 = vector.shape_cast %43 : vector<1x8x512xf32> to vector<8x512xf32>
    %45 = arith.truncf %40 : vector<8x128xf32> to vector<8x128xbf16>
    %cst_23 = arith.constant dense<0.000000e+00> : vector<8x512xf32>
    %46 = tpu.matmul %45, %14, %cst_23 {dimension_numbers = #tpu.dot_dimension_numbers<[1], [0], [0], [1], [0, 0, 1, 1], [], []>} : vector<8x128xbf16>, vector<128x512xbf16>, vector<8x512xf32> -> vector<8x512xf32>
    %47 = arith.addf %44, %46 : vector<8x512xf32>
    %48 = vector.extract_strided_slice %47 {offsets = [0, 0], sizes = [8, 384], strides = [1, 1]} : vector<8x512xf32> to vector<8x384xf32>
    %49 = arith.negf %48 : vector<8x384xf32>
    %50 = math.exp %49 : vector<8x384xf32>
    %cst_24 = arith.constant 1.000000e+00 : f32
    %51 = vector.broadcast %cst_24 : f32 to vector<8x384xf32>
    %52 = arith.addf %51, %50 : vector<8x384xf32>
    %53 = arith.divf %51, %52 : vector<8x384xf32>
    %54 = vector.extract_strided_slice %47 {offsets = [0, 384], sizes = [8, 128], strides = [1, 1]} : vector<8x512xf32> to vector<8x128xf32>
    %55 = math.tanh %54 : vector<8x128xf32>
    %56 = vector.extract_strided_slice %53 {offsets = [0, 0], sizes = [8, 128], strides = [1, 1]} : vector<8x384xf32> to vector<8x128xf32>
    %57 = vector.extract_strided_slice %53 {offsets = [0, 128], sizes = [8, 128], strides = [1, 1]} : vector<8x384xf32> to vector<8x128xf32>
    %58 = vector.extract_strided_slice %53 {offsets = [0, 256], sizes = [8, 128], strides = [1, 1]} : vector<8x384xf32> to vector<8x128xf32>
    %59 = arith.mulf %57, %41 : vector<8x128xf32>
    %60 = arith.mulf %56, %55 : vector<8x128xf32>
    %61 = arith.addf %59, %60 : vector<8x128xf32>
    %62 = math.tanh %61 : vector<8x128xf32>
    %63 = arith.mulf %58, %62 : vector<8x128xf32>
    %64 = arith.cmpi slt, %c1_i32, %13 : i32
    %65 = arith.select %64, %63, %40 : vector<8x128xf32>
    %66 = arith.select %64, %61, %41 : vector<8x128xf32>
    %c2_i32 = arith.constant 2 : i32
    %67 = arith.index_cast %c2_i32 : i32 to index
    %c0_25 = arith.constant 0 : index
    %c0_26 = arith.constant 0 : index
    %68 = vector.load %arg12[%67, %c0_25, %c0_26] : memref<8x8x512xf32, #tpu.memory_space<vmem>>, vector<1x8x512xf32>
    %69 = vector.shape_cast %68 : vector<1x8x512xf32> to vector<8x512xf32>
    %70 = arith.truncf %65 : vector<8x128xf32> to vector<8x128xbf16>
    %cst_27 = arith.constant dense<0.000000e+00> : vector<8x512xf32>
    %71 = tpu.matmul %70, %14, %cst_27 {dimension_numbers = #tpu.dot_dimension_numbers<[1], [0], [0], [1], [0, 0, 1, 1], [], []>} : vector<8x128xbf16>, vector<128x512xbf16>, vector<8x512xf32> -> vector<8x512xf32>
    %72 = arith.addf %69, %71 : vector<8x512xf32>
    %73 = vector.extract_strided_slice %72 {offsets = [0, 0], sizes = [8, 384], strides = [1, 1]} : vector<8x512xf32> to vector<8x384xf32>
    %74 = arith.negf %73 : vector<8x384xf32>
    %75 = math.exp %74 : vector<8x384xf32>
    %cst_28 = arith.constant 1.000000e+00 : f32
    %76 = vector.broadcast %cst_28 : f32 to vector<8x384xf32>
    %77 = arith.addf %76, %75 : vector<8x384xf32>
    %78 = arith.divf %76, %77 : vector<8x384xf32>
    %79 = vector.extract_strided_slice %72 {offsets = [0, 384], sizes = [8, 128], strides = [1, 1]} : vector<8x512xf32> to vector<8x128xf32>
    %80 = math.tanh %79 : vector<8x128xf32>
    %81 = vector.extract_strided_slice %78 {offsets = [0, 0], sizes = [8, 128], strides = [1, 1]} : vector<8x384xf32> to vector<8x128xf32>
    %82 = vector.extract_strided_slice %78 {offsets = [0, 128], sizes = [8, 128], strides = [1, 1]} : vector<8x384xf32> to vector<8x128xf32>
    %83 = vector.extract_strided_slice %78 {offsets = [0, 256], sizes = [8, 128], strides = [1, 1]} : vector<8x384xf32> to vector<8x128xf32>
    %84 = arith.mulf %82, %66 : vector<8x128xf32>
    %85 = arith.mulf %81, %80 : vector<8x128xf32>
    %86 = arith.addf %84, %85 : vector<8x128xf32>
    %87 = math.tanh %86 : vector<8x128xf32>
    %88 = arith.mulf %83, %87 : vector<8x128xf32>
    %89 = arith.cmpi slt, %c2_i32, %13 : i32
    %90 = arith.select %89, %88, %65 : vector<8x128xf32>
    %91 = arith.select %89, %86, %66 : vector<8x128xf32>
    %c3_i32 = arith.constant 3 : i32
    %92 = arith.index_cast %c3_i32 : i32 to index
    %c0_29 = arith.constant 0 : index
    %c0_30 = arith.constant 0 : index
    %93 = vector.load %arg12[%92, %c0_29, %c0_30] : memref<8x8x512xf32, #tpu.memory_space<vmem>>, vector<1x8x512xf32>
    %94 = vector.shape_cast %93 : vector<1x8x512xf32> to vector<8x512xf32>
    %95 = arith.truncf %90 : vector<8x128xf32> to vector<8x128xbf16>
    %cst_31 = arith.constant dense<0.000000e+00> : vector<8x512xf32>
    %96 = tpu.matmul %95, %14, %cst_31 {dimension_numbers = #tpu.dot_dimension_numbers<[1], [0], [0], [1], [0, 0, 1, 1], [], []>} : vector<8x128xbf16>, vector<128x512xbf16>, vector<8x512xf32> -> vector<8x512xf32>
    %97 = arith.addf %94, %96 : vector<8x512xf32>
    %98 = vector.extract_strided_slice %97 {offsets = [0, 0], sizes = [8, 384], strides = [1, 1]} : vector<8x512xf32> to vector<8x384xf32>
    %99 = arith.negf %98 : vector<8x384xf32>
    %100 = math.exp %99 : vector<8x384xf32>
    %cst_32 = arith.constant 1.000000e+00 : f32
    %101 = vector.broadcast %cst_32 : f32 to vector<8x384xf32>
    %102 = arith.addf %101, %100 : vector<8x384xf32>
    %103 = arith.divf %101, %102 : vector<8x384xf32>
    %104 = vector.extract_strided_slice %97 {offsets = [0, 384], sizes = [8, 128], strides = [1, 1]} : vector<8x512xf32> to vector<8x128xf32>
    %105 = math.tanh %104 : vector<8x128xf32>
    %106 = vector.extract_strided_slice %103 {offsets = [0, 0], sizes = [8, 128], strides = [1, 1]} : vector<8x384xf32> to vector<8x128xf32>
    %107 = vector.extract_strided_slice %103 {offsets = [0, 128], sizes = [8, 128], strides = [1, 1]} : vector<8x384xf32> to vector<8x128xf32>
    %108 = vector.extract_strided_slice %103 {offsets = [0, 256], sizes = [8, 128], strides = [1, 1]} : vector<8x384xf32> to vector<8x128xf32>
    %109 = arith.mulf %107, %91 : vector<8x128xf32>
    %110 = arith.mulf %106, %105 : vector<8x128xf32>
    %111 = arith.addf %109, %110 : vector<8x128xf32>
    %112 = math.tanh %111 : vector<8x128xf32>
    %113 = arith.mulf %108, %112 : vector<8x128xf32>
    %114 = arith.cmpi slt, %c3_i32, %13 : i32
    %115 = arith.select %114, %113, %90 : vector<8x128xf32>
    %116 = arith.select %114, %111, %91 : vector<8x128xf32>
    %c4_i32 = arith.constant 4 : i32
    %117 = arith.index_cast %c4_i32 : i32 to index
    %c0_33 = arith.constant 0 : index
    %c0_34 = arith.constant 0 : index
    %118 = vector.load %arg12[%117, %c0_33, %c0_34] : memref<8x8x512xf32, #tpu.memory_space<vmem>>, vector<1x8x512xf32>
    %119 = vector.shape_cast %118 : vector<1x8x512xf32> to vector<8x512xf32>
    %120 = arith.truncf %115 : vector<8x128xf32> to vector<8x128xbf16>
    %cst_35 = arith.constant dense<0.000000e+00> : vector<8x512xf32>
    %121 = tpu.matmul %120, %14, %cst_35 {dimension_numbers = #tpu.dot_dimension_numbers<[1], [0], [0], [1], [0, 0, 1, 1], [], []>} : vector<8x128xbf16>, vector<128x512xbf16>, vector<8x512xf32> -> vector<8x512xf32>
    %122 = arith.addf %119, %121 : vector<8x512xf32>
    %123 = vector.extract_strided_slice %122 {offsets = [0, 0], sizes = [8, 384], strides = [1, 1]} : vector<8x512xf32> to vector<8x384xf32>
    %124 = arith.negf %123 : vector<8x384xf32>
    %125 = math.exp %124 : vector<8x384xf32>
    %cst_36 = arith.constant 1.000000e+00 : f32
    %126 = vector.broadcast %cst_36 : f32 to vector<8x384xf32>
    %127 = arith.addf %126, %125 : vector<8x384xf32>
    %128 = arith.divf %126, %127 : vector<8x384xf32>
    %129 = vector.extract_strided_slice %122 {offsets = [0, 384], sizes = [8, 128], strides = [1, 1]} : vector<8x512xf32> to vector<8x128xf32>
    %130 = math.tanh %129 : vector<8x128xf32>
    %131 = vector.extract_strided_slice %128 {offsets = [0, 0], sizes = [8, 128], strides = [1, 1]} : vector<8x384xf32> to vector<8x128xf32>
    %132 = vector.extract_strided_slice %128 {offsets = [0, 128], sizes = [8, 128], strides = [1, 1]} : vector<8x384xf32> to vector<8x128xf32>
    %133 = vector.extract_strided_slice %128 {offsets = [0, 256], sizes = [8, 128], strides = [1, 1]} : vector<8x384xf32> to vector<8x128xf32>
    %134 = arith.mulf %132, %116 : vector<8x128xf32>
    %135 = arith.mulf %131, %130 : vector<8x128xf32>
    %136 = arith.addf %134, %135 : vector<8x128xf32>
    %137 = math.tanh %136 : vector<8x128xf32>
    %138 = arith.mulf %133, %137 : vector<8x128xf32>
    %139 = arith.cmpi slt, %c4_i32, %13 : i32
    %140 = arith.select %139, %138, %115 : vector<8x128xf32>
    %141 = arith.select %139, %136, %116 : vector<8x128xf32>
    %c5_i32 = arith.constant 5 : i32
    %142 = arith.index_cast %c5_i32 : i32 to index
    %c0_37 = arith.constant 0 : index
    %c0_38 = arith.constant 0 : index
    %143 = vector.load %arg12[%142, %c0_37, %c0_38] : memref<8x8x512xf32, #tpu.memory_space<vmem>>, vector<1x8x512xf32>
    %144 = vector.shape_cast %143 : vector<1x8x512xf32> to vector<8x512xf32>
    %145 = arith.truncf %140 : vector<8x128xf32> to vector<8x128xbf16>
    %cst_39 = arith.constant dense<0.000000e+00> : vector<8x512xf32>
    %146 = tpu.matmul %145, %14, %cst_39 {dimension_numbers = #tpu.dot_dimension_numbers<[1], [0], [0], [1], [0, 0, 1, 1], [], []>} : vector<8x128xbf16>, vector<128x512xbf16>, vector<8x512xf32> -> vector<8x512xf32>
    %147 = arith.addf %144, %146 : vector<8x512xf32>
    %148 = vector.extract_strided_slice %147 {offsets = [0, 0], sizes = [8, 384], strides = [1, 1]} : vector<8x512xf32> to vector<8x384xf32>
    %149 = arith.negf %148 : vector<8x384xf32>
    %150 = math.exp %149 : vector<8x384xf32>
    %cst_40 = arith.constant 1.000000e+00 : f32
    %151 = vector.broadcast %cst_40 : f32 to vector<8x384xf32>
    %152 = arith.addf %151, %150 : vector<8x384xf32>
    %153 = arith.divf %151, %152 : vector<8x384xf32>
    %154 = vector.extract_strided_slice %147 {offsets = [0, 384], sizes = [8, 128], strides = [1, 1]} : vector<8x512xf32> to vector<8x128xf32>
    %155 = math.tanh %154 : vector<8x128xf32>
    %156 = vector.extract_strided_slice %153 {offsets = [0, 0], sizes = [8, 128], strides = [1, 1]} : vector<8x384xf32> to vector<8x128xf32>
    %157 = vector.extract_strided_slice %153 {offsets = [0, 128], sizes = [8, 128], strides = [1, 1]} : vector<8x384xf32> to vector<8x128xf32>
    %158 = vector.extract_strided_slice %153 {offsets = [0, 256], sizes = [8, 128], strides = [1, 1]} : vector<8x384xf32> to vector<8x128xf32>
    %159 = arith.mulf %157, %141 : vector<8x128xf32>
    %160 = arith.mulf %156, %155 : vector<8x128xf32>
    %161 = arith.addf %159, %160 : vector<8x128xf32>
    %162 = math.tanh %161 : vector<8x128xf32>
    %163 = arith.mulf %158, %162 : vector<8x128xf32>
    %164 = arith.cmpi slt, %c5_i32, %13 : i32
    %165 = arith.select %164, %163, %140 : vector<8x128xf32>
    %166 = arith.select %164, %161, %141 : vector<8x128xf32>
    %c6_i32 = arith.constant 6 : i32
    %167 = arith.index_cast %c6_i32 : i32 to index
    %c0_41 = arith.constant 0 : index
    %c0_42 = arith.constant 0 : index
    %168 = vector.load %arg12[%167, %c0_41, %c0_42] : memref<8x8x512xf32, #tpu.memory_space<vmem>>, vector<1x8x512xf32>
    %169 = vector.shape_cast %168 : vector<1x8x512xf32> to vector<8x512xf32>
    %170 = arith.truncf %165 : vector<8x128xf32> to vector<8x128xbf16>
    %cst_43 = arith.constant dense<0.000000e+00> : vector<8x512xf32>
    %171 = tpu.matmul %170, %14, %cst_43 {dimension_numbers = #tpu.dot_dimension_numbers<[1], [0], [0], [1], [0, 0, 1, 1], [], []>} : vector<8x128xbf16>, vector<128x512xbf16>, vector<8x512xf32> -> vector<8x512xf32>
    %172 = arith.addf %169, %171 : vector<8x512xf32>
    %173 = vector.extract_strided_slice %172 {offsets = [0, 0], sizes = [8, 384], strides = [1, 1]} : vector<8x512xf32> to vector<8x384xf32>
    %174 = arith.negf %173 : vector<8x384xf32>
    %175 = math.exp %174 : vector<8x384xf32>
    %cst_44 = arith.constant 1.000000e+00 : f32
    %176 = vector.broadcast %cst_44 : f32 to vector<8x384xf32>
    %177 = arith.addf %176, %175 : vector<8x384xf32>
    %178 = arith.divf %176, %177 : vector<8x384xf32>
    %179 = vector.extract_strided_slice %172 {offsets = [0, 384], sizes = [8, 128], strides = [1, 1]} : vector<8x512xf32> to vector<8x128xf32>
    %180 = math.tanh %179 : vector<8x128xf32>
    %181 = vector.extract_strided_slice %178 {offsets = [0, 0], sizes = [8, 128], strides = [1, 1]} : vector<8x384xf32> to vector<8x128xf32>
    %182 = vector.extract_strided_slice %178 {offsets = [0, 128], sizes = [8, 128], strides = [1, 1]} : vector<8x384xf32> to vector<8x128xf32>
    %183 = vector.extract_strided_slice %178 {offsets = [0, 256], sizes = [8, 128], strides = [1, 1]} : vector<8x384xf32> to vector<8x128xf32>
    %184 = arith.mulf %182, %166 : vector<8x128xf32>
    %185 = arith.mulf %181, %180 : vector<8x128xf32>
    %186 = arith.addf %184, %185 : vector<8x128xf32>
    %187 = math.tanh %186 : vector<8x128xf32>
    %188 = arith.mulf %183, %187 : vector<8x128xf32>
    %189 = arith.cmpi slt, %c6_i32, %13 : i32
    %190 = arith.select %189, %188, %165 : vector<8x128xf32>
    %191 = arith.select %189, %186, %166 : vector<8x128xf32>
    %c7_i32 = arith.constant 7 : i32
    %192 = arith.index_cast %c7_i32 : i32 to index
    %c0_45 = arith.constant 0 : index
    %c0_46 = arith.constant 0 : index
    %193 = vector.load %arg12[%192, %c0_45, %c0_46] : memref<8x8x512xf32, #tpu.memory_space<vmem>>, vector<1x8x512xf32>
    %194 = vector.shape_cast %193 : vector<1x8x512xf32> to vector<8x512xf32>
    %195 = arith.truncf %190 : vector<8x128xf32> to vector<8x128xbf16>
    %cst_47 = arith.constant dense<0.000000e+00> : vector<8x512xf32>
    %196 = tpu.matmul %195, %14, %cst_47 {dimension_numbers = #tpu.dot_dimension_numbers<[1], [0], [0], [1], [0, 0, 1, 1], [], []>} : vector<8x128xbf16>, vector<128x512xbf16>, vector<8x512xf32> -> vector<8x512xf32>
    %197 = arith.addf %194, %196 : vector<8x512xf32>
    %198 = vector.extract_strided_slice %197 {offsets = [0, 0], sizes = [8, 384], strides = [1, 1]} : vector<8x512xf32> to vector<8x384xf32>
    %199 = arith.negf %198 : vector<8x384xf32>
    %200 = math.exp %199 : vector<8x384xf32>
    %cst_48 = arith.constant 1.000000e+00 : f32
    %201 = vector.broadcast %cst_48 : f32 to vector<8x384xf32>
    %202 = arith.addf %201, %200 : vector<8x384xf32>
    %203 = arith.divf %201, %202 : vector<8x384xf32>
    %204 = vector.extract_strided_slice %197 {offsets = [0, 384], sizes = [8, 128], strides = [1, 1]} : vector<8x512xf32> to vector<8x128xf32>
    %205 = math.tanh %204 : vector<8x128xf32>
    %206 = vector.extract_strided_slice %203 {offsets = [0, 0], sizes = [8, 128], strides = [1, 1]} : vector<8x384xf32> to vector<8x128xf32>
    %207 = vector.extract_strided_slice %203 {offsets = [0, 128], sizes = [8, 128], strides = [1, 1]} : vector<8x384xf32> to vector<8x128xf32>
    %208 = vector.extract_strided_slice %203 {offsets = [0, 256], sizes = [8, 128], strides = [1, 1]} : vector<8x384xf32> to vector<8x128xf32>
    %209 = arith.mulf %207, %191 : vector<8x128xf32>
    %210 = arith.mulf %206, %205 : vector<8x128xf32>
    %211 = arith.addf %209, %210 : vector<8x128xf32>
    %212 = math.tanh %211 : vector<8x128xf32>
    %213 = arith.mulf %208, %212 : vector<8x128xf32>
    %214 = arith.cmpi slt, %c7_i32, %13 : i32
    %215 = arith.select %214, %213, %190 : vector<8x128xf32>
    %216 = arith.select %214, %211, %191 : vector<8x128xf32>
    %c8_i32 = arith.constant 8 : i32
    %c0_49 = arith.constant 0 : index
    %c0_50 = arith.constant 0 : index
    %217 = vector.load %arg10[%c0_49, %c0_50] : memref<8x128xf32, #tpu.memory_space<vmem>>, vector<8x128xf32>
    tpu.vector_store %arg10[%c0_49, %c0_50], %215 {strides = array<i32>} : memref<8x128xf32, #tpu.memory_space<vmem>>, vector<8x128xf32>,
    %c0_51 = arith.constant 0 : index
    %c0_52 = arith.constant 0 : index
    %218 = vector.load %arg11[%c0_51, %c0_52] : memref<8x128xf32, #tpu.memory_space<vmem>>, vector<8x128xf32>
    tpu.vector_store %arg11[%c0_51, %c0_52], %216 {strides = array<i32>} : memref<8x128xf32, #tpu.memory_space<vmem>>, vector<8x128xf32>,
    %c0_i32_53 = arith.constant 0 : i32
    %219 = arith.cmpi eq, %arg1, %c0_i32_53 : i32
    %220 = arith.extui %219 : i1 to i32
    %c0_i32_54 = arith.constant 0 : i32
    %221 = arith.cmpi ne, %220, %c0_i32_54 : i32
    scf.if %221 {
      %c0_55 = arith.constant 0 : index
      %c0_56 = arith.constant 0 : index
      %222 = vector.load %arg10[%c0_55, %c0_56] : memref<8x128xf32, #tpu.memory_space<vmem>>, vector<8x128xf32>
      %223 = arith.truncf %222 : vector<8x128xf32> to vector<8x128xbf16>
      %c0_57 = arith.constant 0 : index
      %c0_58 = arith.constant 0 : index
      %224 = vector.load %arg15[%c0_57, %c0_58] : memref<128x128xbf16, #tpu.memory_space<vmem>>, vector<128x128xbf16>
      %cst_59 = arith.constant dense<0.000000e+00> : vector<8x128xf32>
      %225 = tpu.matmul %223, %224, %cst_59 {dimension_numbers = #tpu.dot_dimension_numbers<[1], [0], [0], [1], [0, 0, 1, 1], [], []>} : vector<8x128xbf16>, vector<128x128xbf16>, vector<8x128xf32> -> vector<8x128xf32>
      %c0_60 = arith.constant 0 : index
      %c0_61 = arith.constant 0 : index
      %226 = vector.load %arg5[%c0_60, %c0_61] : memref<1x128xf32, #tpu.memory_space<vmem>>, vector<1x128xf32>
      %227 = vector.broadcast %226 : vector<1x128xf32> to vector<8x128xf32>
      %228 = arith.addf %225, %227 : vector<8x128xf32>
      %c0_62 = arith.constant 0 : index
      %c0_63 = arith.constant 0 : index
      %229 = vector.load %arg9[%c0_62, %c0_63] : memref<8x128xf32, #tpu.memory_space<vmem>>, vector<8x128xf32>
      tpu.vector_store %arg9[%c0_62, %c0_63], %228 {strides = array<i32>} : memref<8x128xf32, #tpu.memory_space<vmem>>, vector<8x128xf32>,
    } else {
    }
    return
  }
  func.func @transform_0(%arg0: i32, %arg1: i32, %arg2: memref<1xi32, #tpu.memory_space<smem>>) -> (i32, i32, i32) {
    %c0_i32 = arith.constant 0 : i32
    %c0_i32_0 = arith.constant 0 : i32
    return %arg1, %arg0, %c0_i32 : i32, i32, i32
  }
  func.func @transform_1(%arg0: i32, %arg1: i32, %arg2: memref<1xi32, #tpu.memory_space<smem>>) -> (i32, i32) {
    %c0_i32 = arith.constant 0 : i32
    %c0_i32_0 = arith.constant 0 : i32
    %c0_i32_1 = arith.constant 0 : i32
    return %c0_i32, %c0_i32_0 : i32, i32
  }
  func.func @transform_2(%arg0: i32, %arg1: i32, %arg2: memref<1xi32, #tpu.memory_space<smem>>) -> (i32, i32) {
    %c0_i32 = arith.constant 0 : i32
    %c0_i32_0 = arith.constant 0 : i32
    %c0_i32_1 = arith.constant 0 : i32
    return %c0_i32, %c0_i32_0 : i32, i32
  }
  func.func @transform_6(%arg0: i32, %arg1: i32, %arg2: memref<1xi32, #tpu.memory_space<smem>>) -> (i32, i32) {
    %c0_i32 = arith.constant 0 : i32
    %c0_i32_0 = arith.constant 0 : i32
    return %arg0, %c0_i32 : i32, i32
  }
}

</mosaic_0001>

<llo_original>
// kernel: tpu_custom_call.1
$region0: #{tpu_custom_call.1}
  #allocation0 [shape = 'u32[]', space=smem, size = 0x4, offset = 0x4, fixed_abs, tag = 'smem constant byte address 0x4 - core index']
  #allocation1 [shape = 'u32[144,128]{1,0:T(1,128)}', space=vmem, size = 0x12000, scoped, tag = 'internal scratch']
  #allocation2 [shape = 'f32[8,128]{1,0:T(8,128)}', space=vmem, size = 0x1000, scoped, tag = 'scratch operand']
  #allocation3 [shape = 'f32[8,128]{1,0:T(8,128)}', space=vmem, size = 0x1000, scoped, tag = 'scratch operand']
  #allocation4 [shape = 'f32[8,8,512]{2,1,0:T(8,128)}', space=vmem, size = 0x20000, scoped, tag = 'scratch operand']
  #allocation5 [shape = 'bf16[128,512]{1,0:T(8,128)(2,1)}', space=vmem, size = 0x20000, scoped, tag = 'scratch operand']
  #allocation6 [shape = 'bf16[128,512]{1,0:T(8,128)(2,1)}', space=vmem, size = 0x20000, scoped, tag = 'scratch operand']
  #allocation7 [shape = 'bf16[128,128]{1,0:T(8,128)(2,1)}', space=vmem, size = 0x8000, scoped, tag = 'scratch operand']
  #allocation8 [shape = 's32[3]{0}', space=sflag, size = 0xc, scoped, tag = 'scratch operand']
  #allocation9 [shape = 's32[1]{0}', space=sflag, size = 0x4, scoped, tag = 'scoped memory for tpu_custom_call.1']
  #allocation10 [shape = 's32[1]{0:T(128)S(6)}', space=smem, size = 0x200, scoped, tag = 'prefetched SMEM operand 0']
  #allocation17 [shape = 's32[]', space=sflag, size = 0x4, offset = 0, fixed_abs, tag = 'sflag constant byte address 0x0 - dummy sync flag']
  #allocation18 [shape = 's32[]', space=sflag, size = 0x4, offset = 0, fixed_abs, tag = 'sflag constant byte address 0x0 - dummy sync flag']
  #allocation19 [shape = 'u32[]', space=smem, size = 0x4, offset = 0x44, fixed_abs, tag = 'smem constant byte address 0x44 - assertion arg 0']
  #allocation20 [shape = 'u32[]', space=smem, size = 0x4, offset = 0x48, fixed_abs, tag = 'smem constant byte address 0x48 - assertion arg 1']
  #allocation21 [shape = 's32[]', space=sflag, size = 0x4, offset = 0, fixed_abs, tag = 'sflag constant byte address 0x0 - dummy sync flag']
  #allocation22 [shape = 's32[]', space=sflag, size = 0x4, offset = 0, fixed_abs, tag = 'sflag constant byte address 0x0 - dummy sync flag']
  #allocation23 [shape = 's32[]', space=sflag, size = 0x4, offset = 0, fixed_abs, tag = 'sflag constant byte address 0x0 - dummy sync flag']
  #allocation24 [shape = 's32[]', space=sflag, size = 0x4, offset = 0, fixed_abs, tag = 'sflag constant byte address 0x0 - dummy sync flag']
  %s0 = inlined_call_operand.<no memory space> [shape: s32[1], index: 0, kind: input, shape index: {}]
  %s1 = inlined_call_operand.hbm [shape: bf16[8,8,128], index: 1, kind: input, shape index: {}]
  %s2 = inlined_call_operand.hbm [shape: f32[1,512], index: 2, kind: input, shape index: {}]
  %s3 = inlined_call_operand.vmem [shape: f32[1,128], index: 3, kind: input, shape index: {}]
  %s4 = inlined_call_operand.hbm [shape: bf16[128,512], index: 4, kind: input, shape index: {}]
  %s5 = inlined_call_operand.hbm [shape: bf16[128,512], index: 5, kind: input, shape index: {}]
  %s6 = inlined_call_operand.hbm [shape: bf16[128,128], index: 6, kind: input, shape index: {}]
  %s7 = inlined_call_operand.hbm [shape: f32[8,128], index: 7, kind: output, shape index: {}]
  %s8 = sld [smem:[#allocation0]]
  $region50: #{tpu_custom_call.1} parent=0
    _
  %s10 = ssub.s32 1, %s8
  %s11 = scalar_select 0, %s10, %s8
  %12 = sst [smem:[#allocation10]] %s0
  $region1: #{tpu_custom_call.1} parent=0
    #allocation11 [shape = 'u8[16384]{0}', space=vmem, size = 0x4000, scoped, tag = 'input window, operand 1, single buffered']
    #allocation12 [shape = 's32[1]{0}', space=sflag, size = 0x4, scoped, tag = 'scoped memory for tpu_custom_call.1']
    #allocation13 [shape = 's32[1]{0}', space=sflag, size = 0x4, scoped, tag = 'scoped memory for tpu_custom_call.1']
    #allocation14 [shape = 'u8[2048]{0}', space=vmem, size = 0x800, scoped, tag = 'input window, operand 2, single buffered']
    #allocation15 [shape = 's32[1]{0}', space=sflag, size = 0x4, scoped, tag = 'scoped memory for tpu_custom_call.1']
    #allocation16 [shape = 'u8[4096]{0}', space=vmem, size = 0x1000, scoped, tag = 'output window, operand 0, single buffered']
    %13 = vsyncpa [#allocation12], 0
    %14 = vsyncpa [#allocation15], 0
    %15 = vsyncpa [#allocation13], 0
    // Predicated region
    $region2: #{tpu_custom_call.1} parent=1 // pred_check
      _
    $region3: #{tpu_custom_call.1} parent=1 // pred_check_branch
      %17 = sbr.rel (0) target = $region5
    $region4: #{tpu_custom_call.1} parent=1 // pred_region
      %s19 = ssub.s32 512, 512
      %20 = vsyncadd [#allocation12], %s19
      %s21 = sshll.u32 [#allocation11], 4
      %s22 = int_to_ptr.vmem [resolvable:$true] %s21
      %27 = dma.hbm_to_vmem [thread:$0]  %s1, 512, %s22, [#allocation12], 64, 64, 4
    $region5: #{tpu_custom_call.1} parent=1 // pred_fallthru
      _
    // Predicated region
    $region6: #{tpu_custom_call.1} parent=1 // pred_check
      _
    $region7: #{tpu_custom_call.1} parent=1 // pred_check_branch
      %29 = sbr.rel (0) target = $region9
    $region8: #{tpu_custom_call.1} parent=1 // pred_region
      %s31 = ssub.s32 64, 64
      %32 = vsyncadd [#allocation15], %s31
      %s34 = sshll.u32 [#allocation14], 4
      %s35 = int_to_ptr.vmem [resolvable:$true] %s34
      %37 = dma.hbm_to_vmem [thread:$0]  %s2, 64, %s35, [#allocation15]
    $region9: #{tpu_custom_call.1} parent=1 // pred_fallthru
      _
    // Predicated region
    $region10: #{tpu_custom_call.1} parent=1 // pred_check
      _
    $region11: #{tpu_custom_call.1} parent=1 // pred_check_branch
      %39 = sbr.rel (0) target = $region13
    $region12: #{tpu_custom_call.1} parent=1 // pred_region
      _
    $region13: #{tpu_custom_call.1} parent=1 // pred_fallthru
      _
    // Predicated region
    $region14: #{tpu_custom_call.1} parent=1 // pred_check
      _
    $region15: #{tpu_custom_call.1} parent=1 // pred_check_branch
      %41 = sbr.rel (0) target = $region17
    $region16: #{tpu_custom_call.1} parent=1 // pred_region
      %42 = dma.done [#allocation12], 512
    $region17: #{tpu_custom_call.1} parent=1 // pred_fallthru
      _
    // Predicated region
    $region18: #{tpu_custom_call.1} parent=1 // pred_check
      _
    $region19: #{tpu_custom_call.1} parent=1 // pred_check_branch
      %44 = sbr.rel (0) target = $region21
    $region20: #{tpu_custom_call.1} parent=1 // pred_region
      %45 = dma.done [#allocation15], 64
    $region21: #{tpu_custom_call.1} parent=1 // pred_fallthru
      _
    %p47 = scmp.eq.s32.totalorder 0, 0
    // Predicated region
    $region22: #{tpu_custom_call.1} parent=1 // pred_check
      %p48 = pneg %p47
    $region23: #{tpu_custom_call.1} parent=1 // pred_check_branch
      %50 = sbr.rel (%p48) target = $region25
    $region24: #{tpu_custom_call.1} parent=1 // pred_region
      // Predicated region
      $region26: #{tpu_custom_call.1} parent=24 // pred_check
        _
      $region27: #{tpu_custom_call.1} parent=24 // pred_check_branch
        %52 = sbr.rel target = $region29
      $region28: #{tpu_custom_call.1} parent=24 // pred_region
        %53 = sst [smem:[#allocation19]] [#allocation18]
        %54 = sst [smem:[#allocation20]] [#allocation17]
      $region29: #{tpu_custom_call.1} parent=24 // pred_fallthru
        _
      %56 = shalt.err (0)
      %s58 = sshll.u32 [#allocation5], 4
      %s59 = int_to_ptr.vmem [resolvable:$true] %s58
      %61 = dma.hbm_to_vmem [thread:$0]  %s4, 4096, %s59, [#allocation8]
      %s62 = scalar_lea.sflag [#allocation8], 1
      // Predicated region
      $region30: #{tpu_custom_call.1} parent=24 // pred_check
        _
      $region31: #{tpu_custom_call.1} parent=24 // pred_check_branch
        %64 = sbr.rel target = $region33
      $region32: #{tpu_custom_call.1} parent=24 // pred_region
        %65 = sst [smem:[#allocation19]] [#allocation22]
        %66 = sst [smem:[#allocation20]] [#allocation21]
      $region33: #{tpu_custom_call.1} parent=24 // pred_fallthru
        _
      %68 = shalt.err (0)
      %s70 = sshll.u32 [#allocation6], 4
      %s71 = int_to_ptr.vmem [resolvable:$true] %s70
      %73 = dma.hbm_to_vmem [thread:$0]  %s5, 4096, %s71, %s62
      %s74 = scalar_lea.sflag [#allocation8], 2
      // Predicated region
      $region34: #{tpu_custom_call.1} parent=24 // pred_check
        _
      $region35: #{tpu_custom_call.1} parent=24 // pred_check_branch
        %76 = sbr.rel target = $region37
      $region36: #{tpu_custom_call.1} parent=24 // pred_region
        %77 = sst [smem:[#allocation19]] [#allocation24]
        %78 = sst [smem:[#allocation20]] [#allocation23]
      $region37: #{tpu_custom_call.1} parent=24 // pred_fallthru
        _
      %80 = shalt.err (0)
      %s82 = sshll.u32 [#allocation7], 4
      %s83 = int_to_ptr.vmem [resolvable:$true] %s82
      %85 = dma.hbm_to_vmem [thread:$0]  %s6, 1024, %s83, %s74
      %s86 = smul.u32 4, 16
      %s87 = smul.u32 %s86, 4
      %s88 = sshll.u32 %s87, 4
      %89 = dma.done [#allocation8], %s88
      %s90 = sshll.u32 %s87, 4
      %91 = dma.done %s62, %s90
      %s92 = smul.u32 %s86, 1
      %s93 = sshll.u32 %s92, 4
      %94 = dma.done %s74, %s93
      %95 = vst [vmem:[#allocation2] sm:$0xff] 0.0
      %96 = vst [vmem:[#allocation3] sm:$0xff] 0.0
    $region25: #{tpu_custom_call.1} parent=1 // pred_fallthru
      _
    %v97 = vld [vmem:[#allocation11] sm:$0xf]
    %v98 = vld [vmem:[#allocation11 + $0x4] sm:$0xf]
    %v99 = vld [vmem:[#allocation11 + $0x8] sm:$0xf]
    %v100 = vld [vmem:[#allocation11 + $0xc] sm:$0xf]
    %v101 = vld [vmem:[#allocation11 + $0x10] sm:$0xf]
    %v102 = vld [vmem:[#allocation11 + $0x14] sm:$0xf]
    %v103 = vld [vmem:[#allocation11 + $0x18] sm:$0xf]
    %v104 = vld [vmem:[#allocation11 + $0x1c] sm:$0xf]
    %v105 = vld [vmem:[#allocation5] sm:$0xff]
    %v106 = vld [vmem:[#allocation5 + $0x8] sm:$0xff]
    %v107 = vld [vmem:[#allocation5 + $0x10] sm:$0xff]
    %v108 = vld [vmem:[#allocation5 + $0x18] sm:$0xff]
    %v109 = vld [vmem:[#allocation5 + $0x20] sm:$0xff]
    %v110 = vld [vmem:[#allocation5 + $0x28] sm:$0xff]
    %v111 = vld [vmem:[#allocation5 + $0x30] sm:$0xff]
    %v112 = vld [vmem:[#allocation5 + $0x38] sm:$0xff]
    %v113 = vld [vmem:[#allocation5 + $0x40] sm:$0xff]
    %v114 = vld [vmem:[#allocation5 + $0x48] sm:$0xff]
    %v115 = vld [vmem:[#allocation5 + $0x50] sm:$0xff]
    %v116 = vld [vmem:[#allocation5 + $0x58] sm:$0xff]
    %v117 = vld [vmem:[#allocation5 + $0x60] sm:$0xff]
    %v118 = vld [vmem:[#allocation5 + $0x68] sm:$0xff]
    %v119 = vld [vmem:[#allocation5 + $0x70] sm:$0xff]
    %v120 = vld [vmem:[#allocation5 + $0x78] sm:$0xff]
    %v121 = vld [vmem:[#allocation5 + $0x80] sm:$0xff]
    %v122 = vld [vmem:[#allocation5 + $0x88] sm:$0xff]
    %v123 = vld [vmem:[#allocation5 + $0x90] sm:$0xff]
    %v124 = vld [vmem:[#allocation5 + $0x98] sm:$0xff]
    %v125 = vld [vmem:[#allocation5 + $0xa0] sm:$0xff]
    %v126 = vld [vmem:[#allocation5 + $0xa8] sm:$0xff]
    %v127 = vld [vmem:[#allocation5 + $0xb0] sm:$0xff]
    %v128 = vld [vmem:[#allocation5 + $0xb8] sm:$0xff]
    %v129 = vld [vmem:[#allocation5 + $0xc0] sm:$0xff]
    %v130 = vld [vmem:[#allocation5 + $0xc8] sm:$0xff]
    %v131 = vld [vmem:[#allocation5 + $0xd0] sm:$0xff]
    %v132 = vld [vmem:[#allocation5 + $0xd8] sm:$0xff]
    %v133 = vld [vmem:[#allocation5 + $0xe0] sm:$0xff]
    %v134 = vld [vmem:[#allocation5 + $0xe8] sm:$0xff]
    %v135 = vld [vmem:[#allocation5 + $0xf0] sm:$0xff]
    %v136 = vld [vmem:[#allocation5 + $0xf8] sm:$0xff]
    %v137 = vld [vmem:[#allocation14] sm:$0xf]
    %v139 = vlaneseq
    %v140 = vshrl.u32 %v139, 7
    %v141 = vsub.s32 0, %v140
    %v142 = vrot.slane %v137, %v141
    %v143 = vlaneseq
    %v144 = vshrl.u32 %v143, 7
    %v145 = vsub.s32 1, %v144
    %v146 = vrot.slane %v137, %v145
    %v147 = vlaneseq
    %v148 = vshrl.u32 %v147, 7
    %v149 = vsub.s32 2, %v148
    %v150 = vrot.slane %v137, %v149
    %v151 = vlaneseq
    %v152 = vshrl.u32 %v151, 7
    %v153 = vsub.s32 3, %v152
    %v154 = vrot.slane %v137, %v153
    %v167 = vunpack.c.l.b16 %v97
    %v168 = vunpack.c.l.b16 %v98
    %v169 = vunpack.c.l.b16 %v99
    %v170 = vunpack.c.l.b16 %v100
    %v171 = vunpack.c.l.b16 %v101
    %v172 = vunpack.c.l.b16 %v102
    %v173 = vunpack.c.l.b16 %v103
    %v174 = vunpack.c.l.b16 %v104
    %v175 = vpack.c.b16 %v168, %v167
    %v176 = vpack.c.b16 %v170, %v169
    %v177 = vpack.c.b16 %v172, %v171
    %v178 = vpack.c.b16 %v174, %v173
    %v215 = vunpack.c.l.b16 %v105
    %v216 = vunpack.c.h.b16 %v105
    %v217 = vunpack.c.l.b16 %v106
    %v218 = vunpack.c.h.b16 %v106
    %v219 = vunpack.c.l.b16 %v107
    %v220 = vunpack.c.h.b16 %v107
    %v221 = vunpack.c.l.b16 %v108
    %v222 = vunpack.c.h.b16 %v108
    %v223 = vunpack.c.l.b16 %v109
    %v224 = vunpack.c.h.b16 %v109
    %v225 = vunpack.c.l.b16 %v110
    %v226 = vunpack.c.h.b16 %v110
    %v227 = vunpack.c.l.b16 %v111
    %v228 = vunpack.c.h.b16 %v111
    %v229 = vunpack.c.l.b16 %v112
    %v230 = vunpack.c.h.b16 %v112
    %v231 = vunpack.c.l.b16 %v113
    %v232 = vunpack.c.h.b16 %v113
    %v233 = vunpack.c.l.b16 %v114
    %v234 = vunpack.c.h.b16 %v114
    %v235 = vunpack.c.l.b16 %v115
    %v236 = vunpack.c.h.b16 %v115
    %v237 = vunpack.c.l.b16 %v116
    %v238 = vunpack.c.h.b16 %v116
    %v239 = vunpack.c.l.b16 %v117
    %v240 = vunpack.c.h.b16 %v117
    %v241 = vunpack.c.l.b16 %v118
    %v242 = vunpack.c.h.b16 %v118
    %v243 = vunpack.c.l.b16 %v119
    %v244 = vunpack.c.h.b16 %v119
    %v245 = vunpack.c.l.b16 %v120
    %v246 = vunpack.c.h.b16 %v120
    %v247 = vunpack.c.l.b16 %v121
    %v248 = vunpack.c.h.b16 %v121
    %v249 = vunpack.c.l.b16 %v122
    %v250 = vunpack.c.h.b16 %v122
    %v251 = vunpack.c.l.b16 %v123
    %v252 = vunpack.c.h.b16 %v123
    %v253 = vunpack.c.l.b16 %v124
    %v254 = vunpack.c.h.b16 %v124
    %v255 = vunpack.c.l.b16 %v125
    %v256 = vunpack.c.h.b16 %v125
    %v257 = vunpack.c.l.b16 %v126
    %v258 = vunpack.c.h.b16 %v126
    %v259 = vunpack.c.l.b16 %v127
    %v260 = vunpack.c.h.b16 %v127
    %v261 = vunpack.c.l.b16 %v128
    %v262 = vunpack.c.h.b16 %v128
    %v263 = vunpack.c.l.b16 %v129
    %v264 = vunpack.c.h.b16 %v129
    %v265 = vunpack.c.l.b16 %v130
    %v266 = vunpack.c.h.b16 %v130
    %v267 = vunpack.c.l.b16 %v131
    %v268 = vunpack.c.h.b16 %v131
    %v269 = vunpack.c.l.b16 %v132
    %v270 = vunpack.c.h.b16 %v132
    %v271 = vunpack.c.l.b16 %v133
    %v272 = vunpack.c.h.b16 %v133
    %v273 = vunpack.c.l.b16 %v134
    %v274 = vunpack.c.h.b16 %v134
    %v275 = vunpack.c.l.b16 %v135
    %v276 = vunpack.c.h.b16 %v135
    %v277 = vunpack.c.l.b16 %v136
    %v278 = vunpack.c.h.b16 %v136
    %v279 = vpack.c.b16 %v219, %v215
    %v280 = vpack.c.b16 %v220, %v216
    %v281 = vpack.c.b16 %v221, %v217
    %v282 = vpack.c.b16 %v222, %v218
    %v283 = vpack.c.b16 %v227, %v223
    %v284 = vpack.c.b16 %v228, %v224
    %v285 = vpack.c.b16 %v229, %v225
    %v286 = vpack.c.b16 %v230, %v226
    %v287 = vpack.c.b16 %v235, %v231
    %v288 = vpack.c.b16 %v236, %v232
    %v289 = vpack.c.b16 %v237, %v233
    %v290 = vpack.c.b16 %v238, %v234
    %v291 = vpack.c.b16 %v243, %v239
    %v292 = vpack.c.b16 %v244, %v240
    %v293 = vpack.c.b16 %v245, %v241
    %v294 = vpack.c.b16 %v246, %v242
    %v295 = vpack.c.b16 %v251, %v247
    %v296 = vpack.c.b16 %v252, %v248
    %v297 = vpack.c.b16 %v253, %v249
    %v298 = vpack.c.b16 %v254, %v250
    %v299 = vpack.c.b16 %v259, %v255
    %v300 = vpack.c.b16 %v260, %v256
    %v301 = vpack.c.b16 %v261, %v257
    %v302 = vpack.c.b16 %v262, %v258
    %v303 = vpack.c.b16 %v267, %v263
    %v304 = vpack.c.b16 %v268, %v264
    %v305 = vpack.c.b16 %v269, %v265
    %v306 = vpack.c.b16 %v270, %v266
    %v307 = vpack.c.b16 %v275, %v271
    %v308 = vpack.c.b16 %v276, %v272
    %v309 = vpack.c.b16 %v277, %v273
    %v310 = vpack.c.b16 %v278, %v274
    %343 = vmatprep.subr.bf16.mxu0 %v308
    %344 = vmatpush1.bf16.msra.mxu0 %v307
    %345 = vmatprep.subr.bf16.mxu0 %v304
    %346 = vmatpush1.bf16.msra.mxu0 %v303
    %347 = vmatprep.subr.bf16.mxu0 %v300
    %348 = vmatpush1.bf16.msra.mxu0 %v299
    %349 = vmatprep.subr.bf16.mxu0 %v296
    %350 = vmatpush1.bf16.msra.mxu0 %v295
    %351 = vmatprep.subr.bf16.mxu0 %v292
    %352 = vmatpush1.bf16.msra.mxu0 %v291
    %353 = vmatprep.subr.bf16.mxu0 %v288
    %354 = vmatpush1.bf16.msra.mxu0 %v287
    %355 = vmatprep.subr.bf16.mxu0 %v284
    %356 = vmatpush1.bf16.msra.mxu0 %v283
    %357 = vmatprep.subr.bf16.mxu0 %v280
    %358 = vmatpush1.bf16.msra.mxu0 %v279
    %359 = vmatprep.subr.bf16.mxu0 0
    %360 = vmatpush2.bf16.msra.mxu0 0
    %361 = vmatprep.subr.bf16.mxu0 0
    %362 = vmatpush2.bf16.msra.mxu0 0
    %363 = vmatprep.subr.bf16.mxu0 0
    %364 = vmatpush2.bf16.msra.mxu0 0
    %365 = vmatprep.subr.bf16.mxu0 0
    %366 = vmatpush2.bf16.msra.mxu0 0
    %367 = vmatprep.subr.bf16.mxu0 0
    %368 = vmatpush2.bf16.msra.mxu0 0
    %369 = vmatprep.subr.bf16.mxu0 0
    %370 = vmatpush2.bf16.msra.mxu0 0
    %371 = vmatprep.subr.bf16.mxu0 0
    %372 = vmatpush2.bf16.msra.mxu0 0
    %373 = vmatprep.subr.bf16.mxu0 0
    %374 = vmatpush2.bf16.msra.mxu0 0
    %375 = vmatprep.mubr.bf16.mxu0 0
    %376 = vmatmul.mubr.bf16.gmra.mxu0 %v175
    %v377 = vpop.f32.mrf.mxu0
    %v378 = vadd.f32 %v142, %v377
    %v379 = vpop.f32.mrf.mxu0
    %v380 = vadd.f32 %v146, %v379
    %v381 = vpop.f32.mrf.mxu0
    %v382 = vadd.f32 %v142, %v381
    %v383 = vpop.f32.mrf.mxu0
    %v384 = vadd.f32 %v146, %v383
    %385 = vmatprep.mubr.bf16.mxu0 0
    %386 = vmatmul.mubr.bf16.gmra.mxu0 %v176
    %v387 = vpop.f32.mrf.mxu0
    %v388 = vadd.f32 %v142, %v387
    %v389 = vpop.f32.mrf.mxu0
    %v390 = vadd.f32 %v146, %v389
    %v391 = vpop.f32.mrf.mxu0
    %v392 = vadd.f32 %v142, %v391
    %v393 = vpop.f32.mrf.mxu0
    %v394 = vadd.f32 %v146, %v393
    %395 = vmatprep.mubr.bf16.mxu0 0
    %396 = vmatmul.mubr.bf16.gmra.mxu0 %v177
    %v397 = vpop.f32.mrf.mxu0
    %v398 = vadd.f32 %v142, %v397
    %v399 = vpop.f32.mrf.mxu0
    %v400 = vadd.f32 %v146, %v399
    %v401 = vpop.f32.mrf.mxu0
    %v402 = vadd.f32 %v142, %v401
    %v403 = vpop.f32.mrf.mxu0
    %v404 = vadd.f32 %v146, %v403
    %405 = vmatprep.mubr.bf16.mxu0 0
    %406 = vmatmul.mubr.bf16.gmra.mxu0 %v178
    %v407 = vpop.f32.mrf.mxu0
    %v408 = vadd.f32 %v142, %v407
    %v409 = vpop.f32.mrf.mxu0
    %v410 = vadd.f32 %v146, %v409
    %v411 = vpop.f32.mrf.mxu0
    %v412 = vadd.f32 %v142, %v411
    %v413 = vpop.f32.mrf.mxu0
    %v414 = vadd.f32 %v146, %v413
    %415 = vdwg.mxu0
    %416 = vmatprep.subr.bf16.mxu0 %v310
    %417 = vmatpush1.bf16.msra.mxu0 %v309
    %418 = vmatprep.subr.bf16.mxu0 %v306
    %419 = vmatpush1.bf16.msra.mxu0 %v305
    %420 = vmatprep.subr.bf16.mxu0 %v302
    %421 = vmatpush1.bf16.msra.mxu0 %v301
    %422 = vmatprep.subr.bf16.mxu0 %v298
    %423 = vmatpush1.bf16.msra.mxu0 %v297
    %424 = vmatprep.subr.bf16.mxu0 %v294
    %425 = vmatpush1.bf16.msra.mxu0 %v293
    %426 = vmatprep.subr.bf16.mxu0 %v290
    %427 = vmatpush1.bf16.msra.mxu0 %v289
    %428 = vmatprep.subr.bf16.mxu0 %v286
    %429 = vmatpush1.bf16.msra.mxu0 %v285
    %430 = vmatprep.subr.bf16.mxu0 %v282
    %431 = vmatpush1.bf16.msra.mxu0 %v281
    %432 = vmatprep.subr.bf16.mxu0 0
    %433 = vmatpush2.bf16.msra.mxu0 0
    %434 = vmatprep.subr.bf16.mxu0 0
    %435 = vmatpush2.bf16.msra.mxu0 0
    %436 = vmatprep.subr.bf16.mxu0 0
    %437 = vmatpush2.bf16.msra.mxu0 0
    %438 = vmatprep.subr.bf16.mxu0 0
    %439 = vmatpush2.bf16.msra.mxu0 0
    %440 = vmatprep.subr.bf16.mxu0 0
    %441 = vmatpush2.bf16.msra.mxu0 0
    %442 = vmatprep.subr.bf16.mxu0 0
    %443 = vmatpush2.bf16.msra.mxu0 0
    %444 = vmatprep.subr.bf16.mxu0 0
    %445 = vmatpush2.bf16.msra.mxu0 0
    %446 = vmatprep.subr.bf16.mxu0 0
    %447 = vmatpush2.bf16.msra.mxu0 0
    %448 = vmatprep.mubr.bf16.mxu0 0
    %449 = vmatmul.mubr.bf16.gmra.mxu0 %v175
    %v450 = vpop.f32.mrf.mxu0
    %v451 = vadd.f32 %v150, %v450
    %v452 = vpop.f32.mrf.mxu0
    %v453 = vadd.f32 %v154, %v452
    %v454 = vpop.f32.mrf.mxu0
    %v455 = vadd.f32 %v150, %v454
    %v456 = vpop.f32.mrf.mxu0
    %v457 = vadd.f32 %v154, %v456
    %458 = vmatprep.mubr.bf16.mxu0 0
    %459 = vmatmul.mubr.bf16.gmra.mxu0 %v176
    %v460 = vpop.f32.mrf.mxu0
    %v461 = vadd.f32 %v150, %v460
    %v462 = vpop.f32.mrf.mxu0
    %v463 = vadd.f32 %v154, %v462
    %v464 = vpop.f32.mrf.mxu0
    %v465 = vadd.f32 %v150, %v464
    %v466 = vpop.f32.mrf.mxu0
    %v467 = vadd.f32 %v154, %v466
    %468 = vmatprep.mubr.bf16.mxu0 0
    %469 = vmatmul.mubr.bf16.gmra.mxu0 %v177
    %v470 = vpop.f32.mrf.mxu0
    %v471 = vadd.f32 %v150, %v470
    %v472 = vpop.f32.mrf.mxu0
    %v473 = vadd.f32 %v154, %v472
    %v474 = vpop.f32.mrf.mxu0
    %v475 = vadd.f32 %v150, %v474
    %v476 = vpop.f32.mrf.mxu0
    %v477 = vadd.f32 %v154, %v476
    %478 = vmatprep.mubr.bf16.mxu0 0
    %479 = vmatmul.mubr.bf16.gmra.mxu0 %v178
    %v480 = vpop.f32.mrf.mxu0
    %v481 = vadd.f32 %v150, %v480
    %v482 = vpop.f32.mrf.mxu0
    %v483 = vadd.f32 %v154, %v482
    %v484 = vpop.f32.mrf.mxu0
    %v485 = vadd.f32 %v150, %v484
    %v486 = vpop.f32.mrf.mxu0
    %v487 = vadd.f32 %v154, %v486
    %488 = vdwg.mxu0
    %489 = vst [vmem:[#allocation4] sm:$0xff] %v378
    %490 = vst [vmem:[#allocation4 + $0x8] sm:$0xff] %v380
    %491 = vst [vmem:[#allocation4 + $0x10] sm:$0xff] %v451
    %492 = vst [vmem:[#allocation4 + $0x18] sm:$0xff] %v453
    %493 = vst [vmem:[#allocation4 + $0x20] sm:$0xff] %v382
    %494 = vst [vmem:[#allocation4 + $0x28] sm:$0xff] %v384
    %495 = vst [vmem:[#allocation4 + $0x30] sm:$0xff] %v455
    %496 = vst [vmem:[#allocation4 + $0x38] sm:$0xff] %v457
    %497 = vst [vmem:[#allocation4 + $0x40] sm:$0xff] %v388
    %498 = vst [vmem:[#allocation4 + $0x48] sm:$0xff] %v390
    %499 = vst [vmem:[#allocation4 + $0x50] sm:$0xff] %v461
    %500 = vst [vmem:[#allocation4 + $0x58] sm:$0xff] %v463
    %501 = vst [vmem:[#allocation4 + $0x60] sm:$0xff] %v392
    %502 = vst [vmem:[#allocation4 + $0x68] sm:$0xff] %v394
    %503 = vst [vmem:[#allocation4 + $0x70] sm:$0xff] %v465
    %504 = vst [vmem:[#allocation4 + $0x78] sm:$0xff] %v467
    %505 = vst [vmem:[#allocation4 + $0x80] sm:$0xff] %v398
    %506 = vst [vmem:[#allocation4 + $0x88] sm:$0xff] %v400
    %507 = vst [vmem:[#allocation4 + $0x90] sm:$0xff] %v471
    %508 = vst [vmem:[#allocation4 + $0x98] sm:$0xff] %v473
    %509 = vst [vmem:[#allocation4 + $0xa0] sm:$0xff] %v402
    %510 = vst [vmem:[#allocation4 + $0xa8] sm:$0xff] %v404
    %511 = vst [vmem:[#allocation4 + $0xb0] sm:$0xff] %v475
    %512 = vst [vmem:[#allocation4 + $0xb8] sm:$0xff] %v477
    %513 = vst [vmem:[#allocation4 + $0xc0] sm:$0xff] %v408
    %514 = vst [vmem:[#allocation4 + $0xc8] sm:$0xff] %v410
    %515 = vst [vmem:[#allocation4 + $0xd0] sm:$0xff] %v481
    %516 = vst [vmem:[#allocation4 + $0xd8] sm:$0xff] %v483
    %517 = vst [vmem:[#allocation4 + $0xe0] sm:$0xff] %v412
    %518 = vst [vmem:[#allocation4 + $0xe8] sm:$0xff] %v414
    %519 = vst [vmem:[#allocation4 + $0xf0] sm:$0xff] %v485
    %520 = vst [vmem:[#allocation4 + $0xf8] sm:$0xff] %v487
    %s521 = sld [smem:[#allocation10]]
    %v522 = vld [vmem:[#allocation6] sm:$0xff]
    %v523 = vld [vmem:[#allocation6 + $0x8] sm:$0xff]
    %v524 = vld [vmem:[#allocation6 + $0x10] sm:$0xff]
    %v525 = vld [vmem:[#allocation6 + $0x18] sm:$0xff]
    %v526 = vld [vmem:[#allocation6 + $0x20] sm:$0xff]
    %v527 = vld [vmem:[#allocation6 + $0x28] sm:$0xff]
    %v528 = vld [vmem:[#allocation6 + $0x30] sm:$0xff]
    %v529 = vld [vmem:[#allocation6 + $0x38] sm:$0xff]
    %v530 = vld [vmem:[#allocation6 + $0x40] sm:$0xff]
    %v531 = vld [vmem:[#allocation6 + $0x48] sm:$0xff]
    %v532 = vld [vmem:[#allocation6 + $0x50] sm:$0xff]
    %v533 = vld [vmem:[#allocation6 + $0x58] sm:$0xff]
    %v534 = vld [vmem:[#allocation6 + $0x60] sm:$0xff]
    %v535 = vld [vmem:[#allocation6 + $0x68] sm:$0xff]
    %v536 = vld [vmem:[#allocation6 + $0x70] sm:$0xff]
    %v537 = vld [vmem:[#allocation6 + $0x78] sm:$0xff]
    %v538 = vld [vmem:[#allocation6 + $0x80] sm:$0xff]
    %v539 = vld [vmem:[#allocation6 + $0x88] sm:$0xff]
    %v540 = vld [vmem:[#allocation6 + $0x90] sm:$0xff]
    %v541 = vld [vmem:[#allocation6 + $0x98] sm:$0xff]
    %v542 = vld [vmem:[#allocation6 + $0xa0] sm:$0xff]
    %v543 = vld [vmem:[#allocation6 + $0xa8] sm:$0xff]
    %v544 = vld [vmem:[#allocation6 + $0xb0] sm:$0xff]
    %v545 = vld [vmem:[#allocation6 + $0xb8] sm:$0xff]
    %v546 = vld [vmem:[#allocation6 + $0xc0] sm:$0xff]
    %v547 = vld [vmem:[#allocation6 + $0xc8] sm:$0xff]
    %v548 = vld [vmem:[#allocation6 + $0xd0] sm:$0xff]
    %v549 = vld [vmem:[#allocation6 + $0xd8] sm:$0xff]
    %v550 = vld [vmem:[#allocation6 + $0xe0] sm:$0xff]
    %v551 = vld [vmem:[#allocation6 + $0xe8] sm:$0xff]
    %v552 = vld [vmem:[#allocation6 + $0xf0] sm:$0xff]
    %v553 = vld [vmem:[#allocation6 + $0xf8] sm:$0xff]
    %v554 = vld [vmem:[#allocation2] sm:$0xff]
    %v555 = vld [vmem:[#allocation3] sm:$0xff]
    %v556 = vld [vmem:[#allocation4] sm:$0xff]
    %v557 = vld [vmem:[#allocation4 + $0x8] sm:$0xff]
    %v558 = vld [vmem:[#allocation4 + $0x10] sm:$0xff]
    %v559 = vld [vmem:[#allocation4 + $0x18] sm:$0xff]
    %v560 = vpack.c.bf16 %v554, %v554
    %v593 = vunpack.c.l.b16 %v522
    %v594 = vunpack.c.h.b16 %v522
    %v595 = vunpack.c.l.b16 %v523
    %v596 = vunpack.c.h.b16 %v523
    %v597 = vunpack.c.l.b16 %v524
    %v598 = vunpack.c.h.b16 %v524
    %v599 = vunpack.c.l.b16 %v525
    %v600 = vunpack.c.h.b16 %v525
    %v601 = vunpack.c.l.b16 %v526
    %v602 = vunpack.c.h.b16 %v526
    %v603 = vunpack.c.l.b16 %v527
    %v604 = vunpack.c.h.b16 %v527
    %v605 = vunpack.c.l.b16 %v528
    %v606 = vunpack.c.h.b16 %v528
    %v607 = vunpack.c.l.b16 %v529
    %v608 = vunpack.c.h.b16 %v529
    %v609 = vunpack.c.l.b16 %v530
    %v610 = vunpack.c.h.b16 %v530
    %v611 = vunpack.c.l.b16 %v531
    %v612 = vunpack.c.h.b16 %v531
    %v613 = vunpack.c.l.b16 %v532
    %v614 = vunpack.c.h.b16 %v532
    %v615 = vunpack.c.l.b16 %v533
    %v616 = vunpack.c.h.b16 %v533
    %v617 = vunpack.c.l.b16 %v534
    %v618 = vunpack.c.h.b16 %v534
    %v619 = vunpack.c.l.b16 %v535
    %v620 = vunpack.c.h.b16 %v535
    %v621 = vunpack.c.l.b16 %v536
    %v622 = vunpack.c.h.b16 %v536
    %v623 = vunpack.c.l.b16 %v537
    %v624 = vunpack.c.h.b16 %v537
    %v625 = vunpack.c.l.b16 %v538
    %v626 = vunpack.c.h.b16 %v538
    %v627 = vunpack.c.l.b16 %v539
    %v628 = vunpack.c.h.b16 %v539
    %v629 = vunpack.c.l.b16 %v540
    %v630 = vunpack.c.h.b16 %v540
    %v631 = vunpack.c.l.b16 %v541
    %v632 = vunpack.c.h.b16 %v541
    %v633 = vunpack.c.l.b16 %v542
    %v634 = vunpack.c.h.b16 %v542
    %v635 = vunpack.c.l.b16 %v543
    %v636 = vunpack.c.h.b16 %v543
    %v637 = vunpack.c.l.b16 %v544
    %v638 = vunpack.c.h.b16 %v544
    %v639 = vunpack.c.l.b16 %v545
    %v640 = vunpack.c.h.b16 %v545
    %v641 = vunpack.c.l.b16 %v546
    %v642 = vunpack.c.h.b16 %v546
    %v643 = vunpack.c.l.b16 %v547
    %v644 = vunpack.c.h.b16 %v547
    %v645 = vunpack.c.l.b16 %v548
    %v646 = vunpack.c.h.b16 %v548
    %v647 = vunpack.c.l.b16 %v549
    %v648 = vunpack.c.h.b16 %v549
    %v649 = vunpack.c.l.b16 %v550
    %v650 = vunpack.c.h.b16 %v550
    %v651 = vunpack.c.l.b16 %v551
    %v652 = vunpack.c.h.b16 %v551
    %v653 = vunpack.c.l.b16 %v552
    %v654 = vunpack.c.h.b16 %v552
    %v655 = vunpack.c.l.b16 %v553
    %v656 = vunpack.c.h.b16 %v553
    %v657 = vpack.c.b16 %v597, %v593
    %v658 = vpack.c.b16 %v598, %v594
    %v659 = vpack.c.b16 %v599, %v595
    %v660 = vpack.c.b16 %v600, %v596
    %v661 = vpack.c.b16 %v605, %v601
    %v662 = vpack.c.b16 %v606, %v602
    %v663 = vpack.c.b16 %v607, %v603
    %v664 = vpack.c.b16 %v608, %v604
    %v665 = vpack.c.b16 %v613, %v609
    %v666 = vpack.c.b16 %v614, %v610
    %v667 = vpack.c.b16 %v615, %v611
    %v668 = vpack.c.b16 %v616, %v612
    %v669 = vpack.c.b16 %v621, %v617
    %v670 = vpack.c.b16 %v622, %v618
    %v671 = vpack.c.b16 %v623, %v619
    %v672 = vpack.c.b16 %v624, %v620
    %v673 = vpack.c.b16 %v629, %v625
    %v674 = vpack.c.b16 %v630, %v626
    %v675 = vpack.c.b16 %v631, %v627
    %v676 = vpack.c.b16 %v632, %v628
    %v677 = vpack.c.b16 %v637, %v633
    %v678 = vpack.c.b16 %v638, %v634
    %v679 = vpack.c.b16 %v639, %v635
    %v680 = vpack.c.b16 %v640, %v636
    %v681 = vpack.c.b16 %v645, %v641
    %v682 = vpack.c.b16 %v646, %v642
    %v683 = vpack.c.b16 %v647, %v643
    %v684 = vpack.c.b16 %v648, %v644
    %v685 = vpack.c.b16 %v653, %v649
    %v686 = vpack.c.b16 %v654, %v650
    %v687 = vpack.c.b16 %v655, %v651
    %v688 = vpack.c.b16 %v656, %v652
    %721 = vmatprep.subr.bf16.mxu0 %v686
    %722 = vmatpush1.bf16.msra.mxu0 %v685
    %723 = vmatprep.subr.bf16.mxu0 %v682
    %724 = vmatpush1.bf16.msra.mxu0 %v681
    %725 = vmatprep.subr.bf16.mxu0 %v678
    %726 = vmatpush1.bf16.msra.mxu0 %v677
    %727 = vmatprep.subr.bf16.mxu0 %v674
    %728 = vmatpush1.bf16.msra.mxu0 %v673
    %729 = vmatprep.subr.bf16.mxu0 %v670
    %730 = vmatpush1.bf16.msra.mxu0 %v669
    %731 = vmatprep.subr.bf16.mxu0 %v666
    %732 = vmatpush1.bf16.msra.mxu0 %v665
    %733 = vmatprep.subr.bf16.mxu0 %v662
    %734 = vmatpush1.bf16.msra.mxu0 %v661
    %735 = vmatprep.subr.bf16.mxu0 %v658
    %736 = vmatpush1.bf16.msra.mxu0 %v657
    %737 = vmatprep.subr.bf16.mxu0 0
    %738 = vmatpush2.bf16.msra.mxu0 0
    %739 = vmatprep.subr.bf16.mxu0 0
    %740 = vmatpush2.bf16.msra.mxu0 0
    %741 = vmatprep.subr.bf16.mxu0 0
    %742 = vmatpush2.bf16.msra.mxu0 0
    %743 = vmatprep.subr.bf16.mxu0 0
    %744 = vmatpush2.bf16.msra.mxu0 0
    %745 = vmatprep.subr.bf16.mxu0 0
    %746 = vmatpush2.bf16.msra.mxu0 0
    %747 = vmatprep.subr.bf16.mxu0 0
    %748 = vmatpush2.bf16.msra.mxu0 0
    %749 = vmatprep.subr.bf16.mxu0 0
    %750 = vmatpush2.bf16.msra.mxu0 0
    %751 = vmatprep.subr.bf16.mxu0 0
    %752 = vmatpush2.bf16.msra.mxu0 0
    %753 = vmatprep.mubr.bf16.mxu0 0
    %754 = vmatmul.mubr.bf16.gmra.mxu0 %v560
    %v755 = vpop.f32.mrf.mxu0
    %v756 = vadd.f32 0.0, %v755
    %v757 = vpop.f32.mrf.mxu0
    %v758 = vadd.f32 0.0, %v757
    %v759 = vpop.f32.mrf.mxu0
    %v760 = vpop.f32.mrf.mxu0
    %761 = vdwg.mxu0
    %762 = vmatprep.subr.bf16.mxu0 %v688
    %763 = vmatpush1.bf16.msra.mxu0 %v687
    %764 = vmatprep.subr.bf16.mxu0 %v684
    %765 = vmatpush1.bf16.msra.mxu0 %v683
    %766 = vmatprep.subr.bf16.mxu0 %v680
    %767 = vmatpush1.bf16.msra.mxu0 %v679
    %768 = vmatprep.subr.bf16.mxu0 %v676
    %769 = vmatpush1.bf16.msra.mxu0 %v675
    %770 = vmatprep.subr.bf16.mxu0 %v672
    %771 = vmatpush1.bf16.msra.mxu0 %v671
    %772 = vmatprep.subr.bf16.mxu0 %v668
    %773 = vmatpush1.bf16.msra.mxu0 %v667
    %774 = vmatprep.subr.bf16.mxu0 %v664
    %775 = vmatpush1.bf16.msra.mxu0 %v663
    %776 = vmatprep.subr.bf16.mxu0 %v660
    %777 = vmatpush1.bf16.msra.mxu0 %v659
    %778 = vmatprep.subr.bf16.mxu0 0
    %779 = vmatpush2.bf16.msra.mxu0 0
    %780 = vmatprep.subr.bf16.mxu0 0
    %781 = vmatpush2.bf16.msra.mxu0 0
    %782 = vmatprep.subr.bf16.mxu0 0
    %783 = vmatpush2.bf16.msra.mxu0 0
    %784 = vmatprep.subr.bf16.mxu0 0
    %785 = vmatpush2.bf16.msra.mxu0 0
    %786 = vmatprep.subr.bf16.mxu0 0
    %787 = vmatpush2.bf16.msra.mxu0 0
    %788 = vmatprep.subr.bf16.mxu0 0
    %789 = vmatpush2.bf16.msra.mxu0 0
    %790 = vmatprep.subr.bf16.mxu0 0
    %791 = vmatpush2.bf16.msra.mxu0 0
    %792 = vmatprep.subr.bf16.mxu0 0
    %793 = vmatpush2.bf16.msra.mxu0 0
    %794 = vmatprep.mubr.bf16.mxu0 0
    %795 = vmatmul.mubr.bf16.gmra.mxu0 %v560
    %v796 = vpop.f32.mrf.mxu0
    %v797 = vadd.f32 0.0, %v796
    %v798 = vpop.f32.mrf.mxu0
    %v799 = vadd.f32 0.0, %v798
    %v800 = vpop.f32.mrf.mxu0
    %v801 = vpop.f32.mrf.mxu0
    %802 = vdwg.mxu0
    %v803 = vadd.f32 %v556, %v756
    %v804 = vadd.f32 %v557, %v758
    %v805 = vadd.f32 %v558, %v797
    %v806 = vadd.f32 %v559, %v799
    %v807 = vxor.u32 %v803, 2147483648
    %v808 = vxor.u32 %v804, 2147483648
    %v809 = vxor.u32 %v805, 2147483648
    %v810 = vmul.f32 %v807, 1.442695
    %v811 = vpow.pop %v810
    %v812 = vmul.f32 %v808, 1.442695
    %v813 = vpow.pop %v812
    %v814 = vmul.f32 %v809, 1.442695
    %v815 = vpow.pop %v814
    %v816 = vadd.f32 %v811, 1.0
    %v817 = vadd.f32 %v813, 1.0
    %v818 = vadd.f32 %v815, 1.0
    %v819 = vrcp.pop %v816
    %v820 = vmul.f32 1.0, %v819
    %v821 = vrcp.pop %v817
    %v822 = vmul.f32 1.0, %v821
    %v823 = vrcp.pop %v818
    %v824 = vmul.f32 1.0, %v823
    %v825 = vtanh.pop %v806
    %v826 = vmul.f32 %v822, %v555
    %v827 = vmul.f32 %v820, %v825
    %v828 = vadd.f32 %v826, %v827
    %v829 = vtanh.pop %v828
    %v830 = vmul.f32 %v824, %v829
    %p831 = scmp.gt.s32.totalorder %s521, 0
    %s832 = scalar_select %p831, 1, 0
    %v833 = vstv %s832
    %vm834 = vcmp.eq.s32.totalorder %v833, 1
    %v835 = vsel %vm834, %v830, %v554
    %v836 = vsel %vm834, %v828, %v555
    %s837 = scalar_lea.vmem [#allocation4], 32
    %v838 = vld [vmem:[%s837] sm:$0xff]
    %v839 = vld [vmem:[%s837 + $0x8] sm:$0xff]
    %v840 = vld [vmem:[%s837 + $0x10] sm:$0xff]
    %v841 = vld [vmem:[%s837 + $0x18] sm:$0xff]
    %v842 = vpack.c.bf16 %v835, %v835
    %843 = vmatprep.subr.bf16.mxu0 %v686
    %844 = vmatpush1.bf16.msra.mxu0 %v685
    %845 = vmatprep.subr.bf16.mxu0 %v682
    %846 = vmatpush1.bf16.msra.mxu0 %v681
    %847 = vmatprep.subr.bf16.mxu0 %v678
    %848 = vmatpush1.bf16.msra.mxu0 %v677
    %849 = vmatprep.subr.bf16.mxu0 %v674
    %850 = vmatpush1.bf16.msra.mxu0 %v673
    %851 = vmatprep.subr.bf16.mxu0 %v670
    %852 = vmatpush1.bf16.msra.mxu0 %v669
    %853 = vmatprep.subr.bf16.mxu0 %v666
    %854 = vmatpush1.bf16.msra.mxu0 %v665
    %855 = vmatprep.subr.bf16.mxu0 %v662
    %856 = vmatpush1.bf16.msra.mxu0 %v661
    %857 = vmatprep.subr.bf16.mxu0 %v658
    %858 = vmatpush1.bf16.msra.mxu0 %v657
    %859 = vmatprep.subr.bf16.mxu0 0
    %860 = vmatpush2.bf16.msra.mxu0 0
    %861 = vmatprep.subr.bf16.mxu0 0
    %862 = vmatpush2.bf16.msra.mxu0 0
    %863 = vmatprep.subr.bf16.mxu0 0
    %864 = vmatpush2.bf16.msra.mxu0 0
    %865 = vmatprep.subr.bf16.mxu0 0
    %866 = vmatpush2.bf16.msra.mxu0 0
    %867 = vmatprep.subr.bf16.mxu0 0
    %868 = vmatpush2.bf16.msra.mxu0 0
    %869 = vmatprep.subr.bf16.mxu0 0
    %870 = vmatpush2.bf16.msra.mxu0 0
    %871 = vmatprep.subr.bf16.mxu0 0
    %872 = vmatpush2.bf16.msra.mxu0 0
    %873 = vmatprep.subr.bf16.mxu0 0
    %874 = vmatpush2.bf16.msra.mxu0 0
    %875 = vmatprep.mubr.bf16.mxu0 0
    %876 = vmatmul.mubr.bf16.gmra.mxu0 %v842
    %v877 = vpop.f32.mrf.mxu0
    %v878 = vadd.f32 0.0, %v877
    %v879 = vpop.f32.mrf.mxu0
    %v880 = vadd.f32 0.0, %v879
    %v881 = vpop.f32.mrf.mxu0
    %v882 = vpop.f32.mrf.mxu0
    %883 = vdwg.mxu0
    %884 = vmatprep.subr.bf16.mxu0 %v688
    %885 = vmatpush1.bf16.msra.mxu0 %v687
    %886 = vmatprep.subr.bf16.mxu0 %v684
    %887 = vmatpush1.bf16.msra.mxu0 %v683
    %888 = vmatprep.subr.bf16.mxu0 %v680
    %889 = vmatpush1.bf16.msra.mxu0 %v679
    %890 = vmatprep.subr.bf16.mxu0 %v676
    %891 = vmatpush1.bf16.msra.mxu0 %v675
    %892 = vmatprep.subr.bf16.mxu0 %v672
    %893 = vmatpush1.bf16.msra.mxu0 %v671
    %894 = vmatprep.subr.bf16.mxu0 %v668
    %895 = vmatpush1.bf16.msra.mxu0 %v667
    %896 = vmatprep.subr.bf16.mxu0 %v664
    %897 = vmatpush1.bf16.msra.mxu0 %v663
    %898 = vmatprep.subr.bf16.mxu0 %v660
    %899 = vmatpush1.bf16.msra.mxu0 %v659
    %900 = vmatprep.subr.bf16.mxu0 0
    %901 = vmatpush2.bf16.msra.mxu0 0
    %902 = vmatprep.subr.bf16.mxu0 0
    %903 = vmatpush2.bf16.msra.mxu0 0
    %904 = vmatprep.subr.bf16.mxu0 0
    %905 = vmatpush2.bf16.msra.mxu0 0
    %906 = vmatprep.subr.bf16.mxu0 0
    %907 = vmatpush2.bf16.msra.mxu0 0
    %908 = vmatprep.subr.bf16.mxu0 0
    %909 = vmatpush2.bf16.msra.mxu0 0
    %910 = vmatprep.subr.bf16.mxu0 0
    %911 = vmatpush2.bf16.msra.mxu0 0
    %912 = vmatprep.subr.bf16.mxu0 0
    %913 = vmatpush2.bf16.msra.mxu0 0
    %914 = vmatprep.subr.bf16.mxu0 0
    %915 = vmatpush2.bf16.msra.mxu0 0
    %916 = vmatprep.mubr.bf16.mxu0 0
    %917 = vmatmul.mubr.bf16.gmra.mxu0 %v842
    %v918 = vpop.f32.mrf.mxu0
    %v919 = vadd.f32 0.0, %v918
    %v920 = vpop.f32.mrf.mxu0
    %v921 = vadd.f32 0.0, %v920
    %v922 = vpop.f32.mrf.mxu0
    %v923 = vpop.f32.mrf.mxu0
    %924 = vdwg.mxu0
    %v925 = vadd.f32 %v838, %v878
    %v926 = vadd.f32 %v839, %v880
    %v927 = vadd.f32 %v840, %v919
    %v928 = vadd.f32 %v841, %v921
    %v929 = vxor.u32 %v925, 2147483648
    %v930 = vxor.u32 %v926, 2147483648
    %v931 = vxor.u32 %v927, 2147483648
    %v932 = vmul.f32 %v929, 1.442695
    %v933 = vpow.pop %v932
    %v934 = vmul.f32 %v930, 1.442695
    %v935 = vpow.pop %v934
    %v936 = vmul.f32 %v931, 1.442695
    %v937 = vpow.pop %v936
    %v938 = vadd.f32 %v933, 1.0
    %v939 = vadd.f32 %v935, 1.0
    %v940 = vadd.f32 %v937, 1.0
    %v941 = vrcp.pop %v938
    %v942 = vmul.f32 1.0, %v941
    %v943 = vrcp.pop %v939
    %v944 = vmul.f32 1.0, %v943
    %v945 = vrcp.pop %v940
    %v946 = vmul.f32 1.0, %v945
    %v947 = vtanh.pop %v928
    %v948 = vmul.f32 %v944, %v836
    %v949 = vmul.f32 %v942, %v947
    %v950 = vadd.f32 %v948, %v949
    %v951 = vtanh.pop %v950
    %v952 = vmul.f32 %v946, %v951
    %p953 = scmp.gt.s32.totalorder %s521, 1
    %s954 = scalar_select %p953, 1, 0
    %v955 = vstv %s954
    %vm956 = vcmp.eq.s32.totalorder %v955, 1
    %v957 = vsel %vm956, %v952, %v835
    %v958 = vsel %vm956, %v950, %v836
    %s959 = scalar_lea.vmem [#allocation4], 64
    %v960 = vld [vmem:[%s959] sm:$0xff]
    %v961 = vld [vmem:[%s959 + $0x8] sm:$0xff]
    %v962 = vld [vmem:[%s959 + $0x10] sm:$0xff]
    %v963 = vld [vmem:[%s959 + $0x18] sm:$0xff]
    %v964 = vpack.c.bf16 %v957, %v957
    %965 = vmatprep.subr.bf16.mxu0 %v686
    %966 = vmatpush1.bf16.msra.mxu0 %v685
    %967 = vmatprep.subr.bf16.mxu0 %v682
    %968 = vmatpush1.bf16.msra.mxu0 %v681
    %969 = vmatprep.subr.bf16.mxu0 %v678
    %970 = vmatpush1.bf16.msra.mxu0 %v677
    %971 = vmatprep.subr.bf16.mxu0 %v674
    %972 = vmatpush1.bf16.msra.mxu0 %v673
    %973 = vmatprep.subr.bf16.mxu0 %v670
    %974 = vmatpush1.bf16.msra.mxu0 %v669
    %975 = vmatprep.subr.bf16.mxu0 %v666
    %976 = vmatpush1.bf16.msra.mxu0 %v665
    %977 = vmatprep.subr.bf16.mxu0 %v662
    %978 = vmatpush1.bf16.msra.mxu0 %v661
    %979 = vmatprep.subr.bf16.mxu0 %v658
    %980 = vmatpush1.bf16.msra.mxu0 %v657
    %981 = vmatprep.subr.bf16.mxu0 0
    %982 = vmatpush2.bf16.msra.mxu0 0
    %983 = vmatprep.subr.bf16.mxu0 0
    %984 = vmatpush2.bf16.msra.mxu0 0
    %985 = vmatprep.subr.bf16.mxu0 0
    %986 = vmatpush2.bf16.msra.mxu0 0
    %987 = vmatprep.subr.bf16.mxu0 0
    %988 = vmatpush2.bf16.msra.mxu0 0
    %989 = vmatprep.subr.bf16.mxu0 0
    %990 = vmatpush2.bf16.msra.mxu0 0
    %991 = vmatprep.subr.bf16.mxu0 0
    %992 = vmatpush2.bf16.msra.mxu0 0
    %993 = vmatprep.subr.bf16.mxu0 0
    %994 = vmatpush2.bf16.msra.mxu0 0
    %995 = vmatprep.subr.bf16.mxu0 0
    %996 = vmatpush2.bf16.msra.mxu0 0
    %997 = vmatprep.mubr.bf16.mxu0 0
    %998 = vmatmul.mubr.bf16.gmra.mxu0 %v964
    %v999 = vpop.f32.mrf.mxu0
    %v1000 = vadd.f32 0.0, %v999
    %v1001 = vpop.f32.mrf.mxu0
    %v1002 = vadd.f32 0.0, %v1001
    %v1003 = vpop.f32.mrf.mxu0
    %v1004 = vpop.f32.mrf.mxu0
    %1005 = vdwg.mxu0
    %1006 = vmatprep.subr.bf16.mxu0 %v688
    %1007 = vmatpush1.bf16.msra.mxu0 %v687
    %1008 = vmatprep.subr.bf16.mxu0 %v684
    %1009 = vmatpush1.bf16.msra.mxu0 %v683
    %1010 = vmatprep.subr.bf16.mxu0 %v680
    %1011 = vmatpush1.bf16.msra.mxu0 %v679
    %1012 = vmatprep.subr.bf16.mxu0 %v676
    %1013 = vmatpush1.bf16.msra.mxu0 %v675
    %1014 = vmatprep.subr.bf16.mxu0 %v672
    %1015 = vmatpush1.bf16.msra.mxu0 %v671
    %1016 = vmatprep.subr.bf16.mxu0 %v668
    %1017 = vmatpush1.bf16.msra.mxu0 %v667
    %1018 = vmatprep.subr.bf16.mxu0 %v664
    %1019 = vmatpush1.bf16.msra.mxu0 %v663
    %1020 = vmatprep.subr.bf16.mxu0 %v660
    %1021 = vmatpush1.bf16.msra.mxu0 %v659
    %1022 = vmatprep.subr.bf16.mxu0 0
    %1023 = vmatpush2.bf16.msra.mxu0 0
    %1024 = vmatprep.subr.bf16.mxu0 0
    %1025 = vmatpush2.bf16.msra.mxu0 0
    %1026 = vmatprep.subr.bf16.mxu0 0
    %1027 = vmatpush2.bf16.msra.mxu0 0
    %1028 = vmatprep.subr.bf16.mxu0 0
    %1029 = vmatpush2.bf16.msra.mxu0 0
    %1030 = vmatprep.subr.bf16.mxu0 0
    %1031 = vmatpush2.bf16.msra.mxu0 0
    %1032 = vmatprep.subr.bf16.mxu0 0
    %1033 = vmatpush2.bf16.msra.mxu0 0
    %1034 = vmatprep.subr.bf16.mxu0 0
    %1035 = vmatpush2.bf16.msra.mxu0 0
    %1036 = vmatprep.subr.bf16.mxu0 0
    %1037 = vmatpush2.bf16.msra.mxu0 0
    %1038 = vmatprep.mubr.bf16.mxu0 0
    %1039 = vmatmul.mubr.bf16.gmra.mxu0 %v964
    %v1040 = vpop.f32.mrf.mxu0
    %v1041 = vadd.f32 0.0, %v1040
    %v1042 = vpop.f32.mrf.mxu0
    %v1043 = vadd.f32 0.0, %v1042
    %v1044 = vpop.f32.mrf.mxu0
    %v1045 = vpop.f32.mrf.mxu0
    %1046 = vdwg.mxu0
    %v1047 = vadd.f32 %v960, %v1000
    %v1048 = vadd.f32 %v961, %v1002
    %v1049 = vadd.f32 %v962, %v1041
    %v1050 = vadd.f32 %v963, %v1043
    %v1051 = vxor.u32 %v1047, 2147483648
    %v1052 = vxor.u32 %v1048, 2147483648
    %v1053 = vxor.u32 %v1049, 2147483648
    %v1054 = vmul.f32 %v1051, 1.442695
    %v1055 = vpow.pop %v1054
    %v1056 = vmul.f32 %v1052, 1.442695
    %v1057 = vpow.pop %v1056
    %v1058 = vmul.f32 %v1053, 1.442695
    %v1059 = vpow.pop %v1058
    %v1060 = vadd.f32 %v1055, 1.0
    %v1061 = vadd.f32 %v1057, 1.0
    %v1062 = vadd.f32 %v1059, 1.0
    %v1063 = vrcp.pop %v1060
    %v1064 = vmul.f32 1.0, %v1063
    %v1065 = vrcp.pop %v1061
    %v1066 = vmul.f32 1.0, %v1065
    %v1067 = vrcp.pop %v1062
    %v1068 = vmul.f32 1.0, %v1067
    %v1069 = vtanh.pop %v1050
    %v1070 = vmul.f32 %v1066, %v958
    %v1071 = vmul.f32 %v1064, %v1069
    %v1072 = vadd.f32 %v1070, %v1071
    %v1073 = vtanh.pop %v1072
    %v1074 = vmul.f32 %v1068, %v1073
    %p1075 = scmp.gt.s32.totalorder %s521, 2
    %s1076 = scalar_select %p1075, 1, 0
    %v1077 = vstv %s1076
    %vm1078 = vcmp.eq.s32.totalorder %v1077, 1
    %v1079 = vsel %vm1078, %v1074, %v957
    %v1080 = vsel %vm1078, %v1072, %v958
    %s1081 = scalar_lea.vmem [#allocation4], 96
    %v1082 = vld [vmem:[%s1081] sm:$0xff]
    %v1083 = vld [vmem:[%s1081 + $0x8] sm:$0xff]
    %v1084 = vld [vmem:[%s1081 + $0x10] sm:$0xff]
    %v1085 = vld [vmem:[%s1081 + $0x18] sm:$0xff]
    %v1086 = vpack.c.bf16 %v1079, %v1079
    %1087 = vmatprep.subr.bf16.mxu0 %v686
    %1088 = vmatpush1.bf16.msra.mxu0 %v685
    %1089 = vmatprep.subr.bf16.mxu0 %v682
    %1090 = vmatpush1.bf16.msra.mxu0 %v681
    %1091 = vmatprep.subr.bf16.mxu0 %v678
    %1092 = vmatpush1.bf16.msra.mxu0 %v677
    %1093 = vmatprep.subr.bf16.mxu0 %v674
    %1094 = vmatpush1.bf16.msra.mxu0 %v673
    %1095 = vmatprep.subr.bf16.mxu0 %v670
    %1096 = vmatpush1.bf16.msra.mxu0 %v669
    %1097 = vmatprep.subr.bf16.mxu0 %v666
    %1098 = vmatpush1.bf16.msra.mxu0 %v665
    %1099 = vmatprep.subr.bf16.mxu0 %v662
    %1100 = vmatpush1.bf16.msra.mxu0 %v661
    %1101 = vmatprep.subr.bf16.mxu0 %v658
    %1102 = vmatpush1.bf16.msra.mxu0 %v657
    %1103 = vmatprep.subr.bf16.mxu0 0
    %1104 = vmatpush2.bf16.msra.mxu0 0
    %1105 = vmatprep.subr.bf16.mxu0 0
    %1106 = vmatpush2.bf16.msra.mxu0 0
    %1107 = vmatprep.subr.bf16.mxu0 0
    %1108 = vmatpush2.bf16.msra.mxu0 0
    %1109 = vmatprep.subr.bf16.mxu0 0
    %1110 = vmatpush2.bf16.msra.mxu0 0
    %1111 = vmatprep.subr.bf16.mxu0 0
    %1112 = vmatpush2.bf16.msra.mxu0 0
    %1113 = vmatprep.subr.bf16.mxu0 0
    %1114 = vmatpush2.bf16.msra.mxu0 0
    %1115 = vmatprep.subr.bf16.mxu0 0
    %1116 = vmatpush2.bf16.msra.mxu0 0
    %1117 = vmatprep.subr.bf16.mxu0 0
    %1118 = vmatpush2.bf16.msra.mxu0 0
    %1119 = vmatprep.mubr.bf16.mxu0 0
    %1120 = vmatmul.mubr.bf16.gmra.mxu0 %v1086
    %v1121 = vpop.f32.mrf.mxu0
    %v1122 = vadd.f32 0.0, %v1121
    %v1123 = vpop.f32.mrf.mxu0
    %v1124 = vadd.f32 0.0, %v1123
    %v1125 = vpop.f32.mrf.mxu0
    %v1126 = vpop.f32.mrf.mxu0
    %1127 = vdwg.mxu0
    %1128 = vmatprep.subr.bf16.mxu0 %v688
    %1129 = vmatpush1.bf16.msra.mxu0 %v687
    %1130 = vmatprep.subr.bf16.mxu0 %v684
    %1131 = vmatpush1.bf16.msra.mxu0 %v683
    %1132 = vmatprep.subr.bf16.mxu0 %v680
    %1133 = vmatpush1.bf16.msra.mxu0 %v679
    %1134 = vmatprep.subr.bf16.mxu0 %v676
    %1135 = vmatpush1.bf16.msra.mxu0 %v675
    %1136 = vmatprep.subr.bf16.mxu0 %v672
    %1137 = vmatpush1.bf16.msra.mxu0 %v671
    %1138 = vmatprep.subr.bf16.mxu0 %v668
    %1139 = vmatpush1.bf16.msra.mxu0 %v667
    %1140 = vmatprep.subr.bf16.mxu0 %v664
    %1141 = vmatpush1.bf16.msra.mxu0 %v663
    %1142 = vmatprep.subr.bf16.mxu0 %v660
    %1143 = vmatpush1.bf16.msra.mxu0 %v659
    %1144 = vmatprep.subr.bf16.mxu0 0
    %1145 = vmatpush2.bf16.msra.mxu0 0
    %1146 = vmatprep.subr.bf16.mxu0 0
    %1147 = vmatpush2.bf16.msra.mxu0 0
    %1148 = vmatprep.subr.bf16.mxu0 0
    %1149 = vmatpush2.bf16.msra.mxu0 0
    %1150 = vmatprep.subr.bf16.mxu0 0
    %1151 = vmatpush2.bf16.msra.mxu0 0
    %1152 = vmatprep.subr.bf16.mxu0 0
    %1153 = vmatpush2.bf16.msra.mxu0 0
    %1154 = vmatprep.subr.bf16.mxu0 0
    %1155 = vmatpush2.bf16.msra.mxu0 0
    %1156 = vmatprep.subr.bf16.mxu0 0
    %1157 = vmatpush2.bf16.msra.mxu0 0
    %1158 = vmatprep.subr.bf16.mxu0 0
    %1159 = vmatpush2.bf16.msra.mxu0 0
    %1160 = vmatprep.mubr.bf16.mxu0 0
    %1161 = vmatmul.mubr.bf16.gmra.mxu0 %v1086
    %v1162 = vpop.f32.mrf.mxu0
    %v1163 = vadd.f32 0.0, %v1162
    %v1164 = vpop.f32.mrf.mxu0
    %v1165 = vadd.f32 0.0, %v1164
    %v1166 = vpop.f32.mrf.mxu0
    %v1167 = vpop.f32.mrf.mxu0
    %1168 = vdwg.mxu0
    %v1169 = vadd.f32 %v1082, %v1122
    %v1170 = vadd.f32 %v1083, %v1124
    %v1171 = vadd.f32 %v1084, %v1163
    %v1172 = vadd.f32 %v1085, %v1165
    %v1173 = vxor.u32 %v1169, 2147483648
    %v1174 = vxor.u32 %v1170, 2147483648
    %v1175 = vxor.u32 %v1171, 2147483648
    %v1176 = vmul.f32 %v1173, 1.442695
    %v1177 = vpow.pop %v1176
    %v1178 = vmul.f32 %v1174, 1.442695
    %v1179 = vpow.pop %v1178
    %v1180 = vmul.f32 %v1175, 1.442695
    %v1181 = vpow.pop %v1180
    %v1182 = vadd.f32 %v1177, 1.0
    %v1183 = vadd.f32 %v1179, 1.0
    %v1184 = vadd.f32 %v1181, 1.0
    %v1185 = vrcp.pop %v1182
    %v1186 = vmul.f32 1.0, %v1185
    %v1187 = vrcp.pop %v1183
    %v1188 = vmul.f32 1.0, %v1187
    %v1189 = vrcp.pop %v1184
    %v1190 = vmul.f32 1.0, %v1189
    %v1191 = vtanh.pop %v1172
    %v1192 = vmul.f32 %v1188, %v1080
    %v1193 = vmul.f32 %v1186, %v1191
    %v1194 = vadd.f32 %v1192, %v1193
    %v1195 = vtanh.pop %v1194
    %v1196 = vmul.f32 %v1190, %v1195
    %p1197 = scmp.gt.s32.totalorder %s521, 3
    %s1198 = scalar_select %p1197, 1, 0
    %v1199 = vstv %s1198
    %vm1200 = vcmp.eq.s32.totalorder %v1199, 1
    %v1201 = vsel %vm1200, %v1196, %v1079
    %v1202 = vsel %vm1200, %v1194, %v1080
    %s1203 = scalar_lea.vmem [#allocation4], 128
    %v1204 = vld [vmem:[%s1203] sm:$0xff]
    %v1205 = vld [vmem:[%s1203 + $0x8] sm:$0xff]
    %v1206 = vld [vmem:[%s1203 + $0x10] sm:$0xff]
    %v1207 = vld [vmem:[%s1203 + $0x18] sm:$0xff]
    %v1208 = vpack.c.bf16 %v1201, %v1201
    %1209 = vmatprep.subr.bf16.mxu0 %v686
    %1210 = vmatpush1.bf16.msra.mxu0 %v685
    %1211 = vmatprep.subr.bf16.mxu0 %v682
    %1212 = vmatpush1.bf16.msra.mxu0 %v681
    %1213 = vmatprep.subr.bf16.mxu0 %v678
    %1214 = vmatpush1.bf16.msra.mxu0 %v677
    %1215 = vmatprep.subr.bf16.mxu0 %v674
    %1216 = vmatpush1.bf16.msra.mxu0 %v673
    %1217 = vmatprep.subr.bf16.mxu0 %v670
    %1218 = vmatpush1.bf16.msra.mxu0 %v669
    %1219 = vmatprep.subr.bf16.mxu0 %v666
    %1220 = vmatpush1.bf16.msra.mxu0 %v665
    %1221 = vmatprep.subr.bf16.mxu0 %v662
    %1222 = vmatpush1.bf16.msra.mxu0 %v661
    %1223 = vmatprep.subr.bf16.mxu0 %v658
    %1224 = vmatpush1.bf16.msra.mxu0 %v657
    %1225 = vmatprep.subr.bf16.mxu0 0
    %1226 = vmatpush2.bf16.msra.mxu0 0
    %1227 = vmatprep.subr.bf16.mxu0 0
    %1228 = vmatpush2.bf16.msra.mxu0 0
    %1229 = vmatprep.subr.bf16.mxu0 0
    %1230 = vmatpush2.bf16.msra.mxu0 0
    %1231 = vmatprep.subr.bf16.mxu0 0
    %1232 = vmatpush2.bf16.msra.mxu0 0
    %1233 = vmatprep.subr.bf16.mxu0 0
    %1234 = vmatpush2.bf16.msra.mxu0 0
    %1235 = vmatprep.subr.bf16.mxu0 0
    %1236 = vmatpush2.bf16.msra.mxu0 0
    %1237 = vmatprep.subr.bf16.mxu0 0
    %1238 = vmatpush2.bf16.msra.mxu0 0
    %1239 = vmatprep.subr.bf16.mxu0 0
    %1240 = vmatpush2.bf16.msra.mxu0 0
    %1241 = vmatprep.mubr.bf16.mxu0 0
    %1242 = vmatmul.mubr.bf16.gmra.mxu0 %v1208
    %v1243 = vpop.f32.mrf.mxu0
    %v1244 = vadd.f32 0.0, %v1243
    %v1245 = vpop.f32.mrf.mxu0
    %v1246 = vadd.f32 0.0, %v1245
    %v1247 = vpop.f32.mrf.mxu0
    %v1248 = vpop.f32.mrf.mxu0
    %1249 = vdwg.mxu0
    %1250 = vmatprep.subr.bf16.mxu0 %v688
    %1251 = vmatpush1.bf16.msra.mxu0 %v687
    %1252 = vmatprep.subr.bf16.mxu0 %v684
    %1253 = vmatpush1.bf16.msra.mxu0 %v683
    %1254 = vmatprep.subr.bf16.mxu0 %v680
    %1255 = vmatpush1.bf16.msra.mxu0 %v679
    %1256 = vmatprep.subr.bf16.mxu0 %v676
    %1257 = vmatpush1.bf16.msra.mxu0 %v675
    %1258 = vmatprep.subr.bf16.mxu0 %v672
    %1259 = vmatpush1.bf16.msra.mxu0 %v671
    %1260 = vmatprep.subr.bf16.mxu0 %v668
    %1261 = vmatpush1.bf16.msra.mxu0 %v667
    %1262 = vmatprep.subr.bf16.mxu0 %v664
    %1263 = vmatpush1.bf16.msra.mxu0 %v663
    %1264 = vmatprep.subr.bf16.mxu0 %v660
    %1265 = vmatpush1.bf16.msra.mxu0 %v659
    %1266 = vmatprep.subr.bf16.mxu0 0
    %1267 = vmatpush2.bf16.msra.mxu0 0
    %1268 = vmatprep.subr.bf16.mxu0 0
    %1269 = vmatpush2.bf16.msra.mxu0 0
    %1270 = vmatprep.subr.bf16.mxu0 0
    %1271 = vmatpush2.bf16.msra.mxu0 0
    %1272 = vmatprep.subr.bf16.mxu0 0
    %1273 = vmatpush2.bf16.msra.mxu0 0
    %1274 = vmatprep.subr.bf16.mxu0 0
    %1275 = vmatpush2.bf16.msra.mxu0 0
    %1276 = vmatprep.subr.bf16.mxu0 0
    %1277 = vmatpush2.bf16.msra.mxu0 0
    %1278 = vmatprep.subr.bf16.mxu0 0
    %1279 = vmatpush2.bf16.msra.mxu0 0
    %1280 = vmatprep.subr.bf16.mxu0 0
    %1281 = vmatpush2.bf16.msra.mxu0 0
    %1282 = vmatprep.mubr.bf16.mxu0 0
    %1283 = vmatmul.mubr.bf16.gmra.mxu0 %v1208
    %v1284 = vpop.f32.mrf.mxu0
    %v1285 = vadd.f32 0.0, %v1284
    %v1286 = vpop.f32.mrf.mxu0
    %v1287 = vadd.f32 0.0, %v1286
    %v1288 = vpop.f32.mrf.mxu0
    %v1289 = vpop.f32.mrf.mxu0
    %1290 = vdwg.mxu0
    %v1291 = vadd.f32 %v1204, %v1244
    %v1292 = vadd.f32 %v1205, %v1246
    %v1293 = vadd.f32 %v1206, %v1285
    %v1294 = vadd.f32 %v1207, %v1287
    %v1295 = vxor.u32 %v1291, 2147483648
    %v1296 = vxor.u32 %v1292, 2147483648
    %v1297 = vxor.u32 %v1293, 2147483648
    %v1298 = vmul.f32 %v1295, 1.442695
    %v1299 = vpow.pop %v1298
    %v1300 = vmul.f32 %v1296, 1.442695
    %v1301 = vpow.pop %v1300
    %v1302 = vmul.f32 %v1297, 1.442695
    %v1303 = vpow.pop %v1302
    %v1304 = vadd.f32 %v1299, 1.0
    %v1305 = vadd.f32 %v1301, 1.0
    %v1306 = vadd.f32 %v1303, 1.0
    %v1307 = vrcp.pop %v1304
    %v1308 = vmul.f32 1.0, %v1307
    %v1309 = vrcp.pop %v1305
    %v1310 = vmul.f32 1.0, %v1309
    %v1311 = vrcp.pop %v1306
    %v1312 = vmul.f32 1.0, %v1311
    %v1313 = vtanh.pop %v1294
    %v1314 = vmul.f32 %v1310, %v1202
    %v1315 = vmul.f32 %v1308, %v1313
    %v1316 = vadd.f32 %v1314, %v1315
    %v1317 = vtanh.pop %v1316
    %v1318 = vmul.f32 %v1312, %v1317
    %p1319 = scmp.gt.s32.totalorder %s521, 4
    %s1320 = scalar_select %p1319, 1, 0
    %v1321 = vstv %s1320
    %vm1322 = vcmp.eq.s32.totalorder %v1321, 1
    %v1323 = vsel %vm1322, %v1318, %v1201
    %v1324 = vsel %vm1322, %v1316, %v1202
    %s1325 = scalar_lea.vmem [#allocation4], 160
    %v1326 = vld [vmem:[%s1325] sm:$0xff]
    %v1327 = vld [vmem:[%s1325 + $0x8] sm:$0xff]
    %v1328 = vld [vmem:[%s1325 + $0x10] sm:$0xff]
    %v1329 = vld [vmem:[%s1325 + $0x18] sm:$0xff]
    %v1330 = vpack.c.bf16 %v1323, %v1323
    %1331 = vmatprep.subr.bf16.mxu0 %v686
    %1332 = vmatpush1.bf16.msra.mxu0 %v685
    %1333 = vmatprep.subr.bf16.mxu0 %v682
    %1334 = vmatpush1.bf16.msra.mxu0 %v681
    %1335 = vmatprep.subr.bf16.mxu0 %v678
    %1336 = vmatpush1.bf16.msra.mxu0 %v677
    %1337 = vmatprep.subr.bf16.mxu0 %v674
    %1338 = vmatpush1.bf16.msra.mxu0 %v673
    %1339 = vmatprep.subr.bf16.mxu0 %v670
    %1340 = vmatpush1.bf16.msra.mxu0 %v669
    %1341 = vmatprep.subr.bf16.mxu0 %v666
    %1342 = vmatpush1.bf16.msra.mxu0 %v665
    %1343 = vmatprep.subr.bf16.mxu0 %v662
    %1344 = vmatpush1.bf16.msra.mxu0 %v661
    %1345 = vmatprep.subr.bf16.mxu0 %v658
    %1346 = vmatpush1.bf16.msra.mxu0 %v657
    %1347 = vmatprep.subr.bf16.mxu0 0
    %1348 = vmatpush2.bf16.msra.mxu0 0
    %1349 = vmatprep.subr.bf16.mxu0 0
    %1350 = vmatpush2.bf16.msra.mxu0 0
    %1351 = vmatprep.subr.bf16.mxu0 0
    %1352 = vmatpush2.bf16.msra.mxu0 0
    %1353 = vmatprep.subr.bf16.mxu0 0
    %1354 = vmatpush2.bf16.msra.mxu0 0
    %1355 = vmatprep.subr.bf16.mxu0 0
    %1356 = vmatpush2.bf16.msra.mxu0 0
    %1357 = vmatprep.subr.bf16.mxu0 0
    %1358 = vmatpush2.bf16.msra.mxu0 0
    %1359 = vmatprep.subr.bf16.mxu0 0
    %1360 = vmatpush2.bf16.msra.mxu0 0
    %1361 = vmatprep.subr.bf16.mxu0 0
    %1362 = vmatpush2.bf16.msra.mxu0 0
    %1363 = vmatprep.mubr.bf16.mxu0 0
    %1364 = vmatmul.mubr.bf16.gmra.mxu0 %v1330
    %v1365 = vpop.f32.mrf.mxu0
    %v1366 = vadd.f32 0.0, %v1365
    %v1367 = vpop.f32.mrf.mxu0
    %v1368 = vadd.f32 0.0, %v1367
    %v1369 = vpop.f32.mrf.mxu0
    %v1370 = vpop.f32.mrf.mxu0
    %1371 = vdwg.mxu0
    %1372 = vmatprep.subr.bf16.mxu0 %v688
    %1373 = vmatpush1.bf16.msra.mxu0 %v687
    %1374 = vmatprep.subr.bf16.mxu0 %v684
    %1375 = vmatpush1.bf16.msra.mxu0 %v683
    %1376 = vmatprep.subr.bf16.mxu0 %v680
    %1377 = vmatpush1.bf16.msra.mxu0 %v679
    %1378 = vmatprep.subr.bf16.mxu0 %v676
    %1379 = vmatpush1.bf16.msra.mxu0 %v675
    %1380 = vmatprep.subr.bf16.mxu0 %v672
    %1381 = vmatpush1.bf16.msra.mxu0 %v671
    %1382 = vmatprep.subr.bf16.mxu0 %v668
    %1383 = vmatpush1.bf16.msra.mxu0 %v667
    %1384 = vmatprep.subr.bf16.mxu0 %v664
    %1385 = vmatpush1.bf16.msra.mxu0 %v663
    %1386 = vmatprep.subr.bf16.mxu0 %v660
    %1387 = vmatpush1.bf16.msra.mxu0 %v659
    %1388 = vmatprep.subr.bf16.mxu0 0
    %1389 = vmatpush2.bf16.msra.mxu0 0
    %1390 = vmatprep.subr.bf16.mxu0 0
    %1391 = vmatpush2.bf16.msra.mxu0 0
    %1392 = vmatprep.subr.bf16.mxu0 0
    %1393 = vmatpush2.bf16.msra.mxu0 0
    %1394 = vmatprep.subr.bf16.mxu0 0
    %1395 = vmatpush2.bf16.msra.mxu0 0
    %1396 = vmatprep.subr.bf16.mxu0 0
    %1397 = vmatpush2.bf16.msra.mxu0 0
    %1398 = vmatprep.subr.bf16.mxu0 0
    %1399 = vmatpush2.bf16.msra.mxu0 0
    %1400 = vmatprep.subr.bf16.mxu0 0
    %1401 = vmatpush2.bf16.msra.mxu0 0
    %1402 = vmatprep.subr.bf16.mxu0 0
    %1403 = vmatpush2.bf16.msra.mxu0 0
    %1404 = vmatprep.mubr.bf16.mxu0 0
    %1405 = vmatmul.mubr.bf16.gmra.mxu0 %v1330
    %v1406 = vpop.f32.mrf.mxu0
    %v1407 = vadd.f32 0.0, %v1406
    %v1408 = vpop.f32.mrf.mxu0
    %v1409 = vadd.f32 0.0, %v1408
    %v1410 = vpop.f32.mrf.mxu0
    %v1411 = vpop.f32.mrf.mxu0
    %1412 = vdwg.mxu0
    %v1413 = vadd.f32 %v1326, %v1366
    %v1414 = vadd.f32 %v1327, %v1368
    %v1415 = vadd.f32 %v1328, %v1407
    %v1416 = vadd.f32 %v1329, %v1409
    %v1417 = vxor.u32 %v1413, 2147483648
    %v1418 = vxor.u32 %v1414, 2147483648
    %v1419 = vxor.u32 %v1415, 2147483648
    %v1420 = vmul.f32 %v1417, 1.442695
    %v1421 = vpow.pop %v1420
    %v1422 = vmul.f32 %v1418, 1.442695
    %v1423 = vpow.pop %v1422
    %v1424 = vmul.f32 %v1419, 1.442695
    %v1425 = vpow.pop %v1424
    %v1426 = vadd.f32 %v1421, 1.0
    %v1427 = vadd.f32 %v1423, 1.0
    %v1428 = vadd.f32 %v1425, 1.0
    %v1429 = vrcp.pop %v1426
    %v1430 = vmul.f32 1.0, %v1429
    %v1431 = vrcp.pop %v1427
    %v1432 = vmul.f32 1.0, %v1431
    %v1433 = vrcp.pop %v1428
    %v1434 = vmul.f32 1.0, %v1433
    %v1435 = vtanh.pop %v1416
    %v1436 = vmul.f32 %v1432, %v1324
    %v1437 = vmul.f32 %v1430, %v1435
    %v1438 = vadd.f32 %v1436, %v1437
    %v1439 = vtanh.pop %v1438
    %v1440 = vmul.f32 %v1434, %v1439
    %p1441 = scmp.gt.s32.totalorder %s521, 5
    %s1442 = scalar_select %p1441, 1, 0
    %v1443 = vstv %s1442
    %vm1444 = vcmp.eq.s32.totalorder %v1443, 1
    %v1445 = vsel %vm1444, %v1440, %v1323
    %v1446 = vsel %vm1444, %v1438, %v1324
    %s1447 = scalar_lea.vmem [#allocation4], 192
    %v1448 = vld [vmem:[%s1447] sm:$0xff]
    %v1449 = vld [vmem:[%s1447 + $0x8] sm:$0xff]
    %v1450 = vld [vmem:[%s1447 + $0x10] sm:$0xff]
    %v1451 = vld [vmem:[%s1447 + $0x18] sm:$0xff]
    %v1452 = vpack.c.bf16 %v1445, %v1445
    %1453 = vmatprep.subr.bf16.mxu0 %v686
    %1454 = vmatpush1.bf16.msra.mxu0 %v685
    %1455 = vmatprep.subr.bf16.mxu0 %v682
    %1456 = vmatpush1.bf16.msra.mxu0 %v681
    %1457 = vmatprep.subr.bf16.mxu0 %v678
    %1458 = vmatpush1.bf16.msra.mxu0 %v677
    %1459 = vmatprep.subr.bf16.mxu0 %v674
    %1460 = vmatpush1.bf16.msra.mxu0 %v673
    %1461 = vmatprep.subr.bf16.mxu0 %v670
    %1462 = vmatpush1.bf16.msra.mxu0 %v669
    %1463 = vmatprep.subr.bf16.mxu0 %v666
    %1464 = vmatpush1.bf16.msra.mxu0 %v665
    %1465 = vmatprep.subr.bf16.mxu0 %v662
    %1466 = vmatpush1.bf16.msra.mxu0 %v661
    %1467 = vmatprep.subr.bf16.mxu0 %v658
    %1468 = vmatpush1.bf16.msra.mxu0 %v657
    %1469 = vmatprep.subr.bf16.mxu0 0
    %1470 = vmatpush2.bf16.msra.mxu0 0
    %1471 = vmatprep.subr.bf16.mxu0 0
    %1472 = vmatpush2.bf16.msra.mxu0 0
    %1473 = vmatprep.subr.bf16.mxu0 0
    %1474 = vmatpush2.bf16.msra.mxu0 0
    %1475 = vmatprep.subr.bf16.mxu0 0
    %1476 = vmatpush2.bf16.msra.mxu0 0
    %1477 = vmatprep.subr.bf16.mxu0 0
    %1478 = vmatpush2.bf16.msra.mxu0 0
    %1479 = vmatprep.subr.bf16.mxu0 0
    %1480 = vmatpush2.bf16.msra.mxu0 0
    %1481 = vmatprep.subr.bf16.mxu0 0
    %1482 = vmatpush2.bf16.msra.mxu0 0
    %1483 = vmatprep.subr.bf16.mxu0 0
    %1484 = vmatpush2.bf16.msra.mxu0 0
    %1485 = vmatprep.mubr.bf16.mxu0 0
    %1486 = vmatmul.mubr.bf16.gmra.mxu0 %v1452
    %v1487 = vpop.f32.mrf.mxu0
    %v1488 = vadd.f32 0.0, %v1487
    %v1489 = vpop.f32.mrf.mxu0
    %v1490 = vadd.f32 0.0, %v1489
    %v1491 = vpop.f32.mrf.mxu0
    %v1492 = vpop.f32.mrf.mxu0
    %1493 = vdwg.mxu0
    %1494 = vmatprep.subr.bf16.mxu0 %v688
    %1495 = vmatpush1.bf16.msra.mxu0 %v687
    %1496 = vmatprep.subr.bf16.mxu0 %v684
    %1497 = vmatpush1.bf16.msra.mxu0 %v683
    %1498 = vmatprep.subr.bf16.mxu0 %v680
    %1499 = vmatpush1.bf16.msra.mxu0 %v679
    %1500 = vmatprep.subr.bf16.mxu0 %v676
    %1501 = vmatpush1.bf16.msra.mxu0 %v675
    %1502 = vmatprep.subr.bf16.mxu0 %v672
    %1503 = vmatpush1.bf16.msra.mxu0 %v671
    %1504 = vmatprep.subr.bf16.mxu0 %v668
    %1505 = vmatpush1.bf16.msra.mxu0 %v667
    %1506 = vmatprep.subr.bf16.mxu0 %v664
    %1507 = vmatpush1.bf16.msra.mxu0 %v663
    %1508 = vmatprep.subr.bf16.mxu0 %v660
    %1509 = vmatpush1.bf16.msra.mxu0 %v659
    %1510 = vmatprep.subr.bf16.mxu0 0
    %1511 = vmatpush2.bf16.msra.mxu0 0
    %1512 = vmatprep.subr.bf16.mxu0 0
    %1513 = vmatpush2.bf16.msra.mxu0 0
    %1514 = vmatprep.subr.bf16.mxu0 0
    %1515 = vmatpush2.bf16.msra.mxu0 0
    %1516 = vmatprep.subr.bf16.mxu0 0
    %1517 = vmatpush2.bf16.msra.mxu0 0
    %1518 = vmatprep.subr.bf16.mxu0 0
    %1519 = vmatpush2.bf16.msra.mxu0 0
    %1520 = vmatprep.subr.bf16.mxu0 0
    %1521 = vmatpush2.bf16.msra.mxu0 0
    %1522 = vmatprep.subr.bf16.mxu0 0
    %1523 = vmatpush2.bf16.msra.mxu0 0
    %1524 = vmatprep.subr.bf16.mxu0 0
    %1525 = vmatpush2.bf16.msra.mxu0 0
    %1526 = vmatprep.mubr.bf16.mxu0 0
    %1527 = vmatmul.mubr.bf16.gmra.mxu0 %v1452
    %v1528 = vpop.f32.mrf.mxu0
    %v1529 = vadd.f32 0.0, %v1528
    %v1530 = vpop.f32.mrf.mxu0
    %v1531 = vadd.f32 0.0, %v1530
    %v1532 = vpop.f32.mrf.mxu0
    %v1533 = vpop.f32.mrf.mxu0
    %1534 = vdwg.mxu0
    %v1535 = vadd.f32 %v1448, %v1488
    %v1536 = vadd.f32 %v1449, %v1490
    %v1537 = vadd.f32 %v1450, %v1529
    %v1538 = vadd.f32 %v1451, %v1531
    %v1539 = vxor.u32 %v1535, 2147483648
    %v1540 = vxor.u32 %v1536, 2147483648
    %v1541 = vxor.u32 %v1537, 2147483648
    %v1542 = vmul.f32 %v1539, 1.442695
    %v1543 = vpow.pop %v1542
    %v1544 = vmul.f32 %v1540, 1.442695
    %v1545 = vpow.pop %v1544
    %v1546 = vmul.f32 %v1541, 1.442695
    %v1547 = vpow.pop %v1546
    %v1548 = vadd.f32 %v1543, 1.0
    %v1549 = vadd.f32 %v1545, 1.0
    %v1550 = vadd.f32 %v1547, 1.0
    %v1551 = vrcp.pop %v1548
    %v1552 = vmul.f32 1.0, %v1551
    %v1553 = vrcp.pop %v1549
    %v1554 = vmul.f32 1.0, %v1553
    %v1555 = vrcp.pop %v1550
    %v1556 = vmul.f32 1.0, %v1555
    %v1557 = vtanh.pop %v1538
    %v1558 = vmul.f32 %v1554, %v1446
    %v1559 = vmul.f32 %v1552, %v1557
    %v1560 = vadd.f32 %v1558, %v1559
    %v1561 = vtanh.pop %v1560
    %v1562 = vmul.f32 %v1556, %v1561
    %p1563 = scmp.gt.s32.totalorder %s521, 6
    %s1564 = scalar_select %p1563, 1, 0
    %v1565 = vstv %s1564
    %vm1566 = vcmp.eq.s32.totalorder %v1565, 1
    %v1567 = vsel %vm1566, %v1562, %v1445
    %v1568 = vsel %vm1566, %v1560, %v1446
    %s1569 = scalar_lea.vmem [#allocation4], 224
    %v1570 = vld [vmem:[%s1569] sm:$0xff]
    %v1571 = vld [vmem:[%s1569 + $0x8] sm:$0xff]
    %v1572 = vld [vmem:[%s1569 + $0x10] sm:$0xff]
    %v1573 = vld [vmem:[%s1569 + $0x18] sm:$0xff]
    %v1574 = vpack.c.bf16 %v1567, %v1567
    %1575 = vmatprep.subr.bf16.mxu0 %v686
    %1576 = vmatpush1.bf16.msra.mxu0 %v685
    %1577 = vmatprep.subr.bf16.mxu0 %v682
    %1578 = vmatpush1.bf16.msra.mxu0 %v681
    %1579 = vmatprep.subr.bf16.mxu0 %v678
    %1580 = vmatpush1.bf16.msra.mxu0 %v677
    %1581 = vmatprep.subr.bf16.mxu0 %v674
    %1582 = vmatpush1.bf16.msra.mxu0 %v673
    %1583 = vmatprep.subr.bf16.mxu0 %v670
    %1584 = vmatpush1.bf16.msra.mxu0 %v669
    %1585 = vmatprep.subr.bf16.mxu0 %v666
    %1586 = vmatpush1.bf16.msra.mxu0 %v665
    %1587 = vmatprep.subr.bf16.mxu0 %v662
    %1588 = vmatpush1.bf16.msra.mxu0 %v661
    %1589 = vmatprep.subr.bf16.mxu0 %v658
    %1590 = vmatpush1.bf16.msra.mxu0 %v657
    %1591 = vmatprep.subr.bf16.mxu0 0
    %1592 = vmatpush2.bf16.msra.mxu0 0
    %1593 = vmatprep.subr.bf16.mxu0 0
    %1594 = vmatpush2.bf16.msra.mxu0 0
    %1595 = vmatprep.subr.bf16.mxu0 0
    %1596 = vmatpush2.bf16.msra.mxu0 0
    %1597 = vmatprep.subr.bf16.mxu0 0
    %1598 = vmatpush2.bf16.msra.mxu0 0
    %1599 = vmatprep.subr.bf16.mxu0 0
    %1600 = vmatpush2.bf16.msra.mxu0 0
    %1601 = vmatprep.subr.bf16.mxu0 0
    %1602 = vmatpush2.bf16.msra.mxu0 0
    %1603 = vmatprep.subr.bf16.mxu0 0
    %1604 = vmatpush2.bf16.msra.mxu0 0
    %1605 = vmatprep.subr.bf16.mxu0 0
    %1606 = vmatpush2.bf16.msra.mxu0 0
    %1607 = vmatprep.mubr.bf16.mxu0 0
    %1608 = vmatmul.mubr.bf16.gmra.mxu0 %v1574
    %v1609 = vpop.f32.mrf.mxu0
    %v1610 = vadd.f32 0.0, %v1609
    %v1611 = vpop.f32.mrf.mxu0
    %v1612 = vadd.f32 0.0, %v1611
    %v1613 = vpop.f32.mrf.mxu0
    %v1614 = vpop.f32.mrf.mxu0
    %1615 = vdwg.mxu0
    %1616 = vmatprep.subr.bf16.mxu0 %v688
    %1617 = vmatpush1.bf16.msra.mxu0 %v687
    %1618 = vmatprep.subr.bf16.mxu0 %v684
    %1619 = vmatpush1.bf16.msra.mxu0 %v683
    %1620 = vmatprep.subr.bf16.mxu0 %v680
    %1621 = vmatpush1.bf16.msra.mxu0 %v679
    %1622 = vmatprep.subr.bf16.mxu0 %v676
    %1623 = vmatpush1.bf16.msra.mxu0 %v675
    %1624 = vmatprep.subr.bf16.mxu0 %v672
    %1625 = vmatpush1.bf16.msra.mxu0 %v671
    %1626 = vmatprep.subr.bf16.mxu0 %v668
    %1627 = vmatpush1.bf16.msra.mxu0 %v667
    %1628 = vmatprep.subr.bf16.mxu0 %v664
    %1629 = vmatpush1.bf16.msra.mxu0 %v663
    %1630 = vmatprep.subr.bf16.mxu0 %v660
    %1631 = vmatpush1.bf16.msra.mxu0 %v659
    %1632 = vmatprep.subr.bf16.mxu0 0
    %1633 = vmatpush2.bf16.msra.mxu0 0
    %1634 = vmatprep.subr.bf16.mxu0 0
    %1635 = vmatpush2.bf16.msra.mxu0 0
    %1636 = vmatprep.subr.bf16.mxu0 0
    %1637 = vmatpush2.bf16.msra.mxu0 0
    %1638 = vmatprep.subr.bf16.mxu0 0
    %1639 = vmatpush2.bf16.msra.mxu0 0
    %1640 = vmatprep.subr.bf16.mxu0 0
    %1641 = vmatpush2.bf16.msra.mxu0 0
    %1642 = vmatprep.subr.bf16.mxu0 0
    %1643 = vmatpush2.bf16.msra.mxu0 0
    %1644 = vmatprep.subr.bf16.mxu0 0
    %1645 = vmatpush2.bf16.msra.mxu0 0
    %1646 = vmatprep.subr.bf16.mxu0 0
    %1647 = vmatpush2.bf16.msra.mxu0 0
    %1648 = vmatprep.mubr.bf16.mxu0 0
    %1649 = vmatmul.mubr.bf16.gmra.mxu0 %v1574
    %v1650 = vpop.f32.mrf.mxu0
    %v1651 = vadd.f32 0.0, %v1650
    %v1652 = vpop.f32.mrf.mxu0
    %v1653 = vadd.f32 0.0, %v1652
    %v1654 = vpop.f32.mrf.mxu0
    %v1655 = vpop.f32.mrf.mxu0
    %1656 = vdwg.mxu0
    %v1657 = vadd.f32 %v1570, %v1610
    %v1658 = vadd.f32 %v1571, %v1612
    %v1659 = vadd.f32 %v1572, %v1651
    %v1660 = vadd.f32 %v1573, %v1653
    %v1661 = vxor.u32 %v1657, 2147483648
    %v1662 = vxor.u32 %v1658, 2147483648
    %v1663 = vxor.u32 %v1659, 2147483648
    %v1664 = vmul.f32 %v1661, 1.442695
    %v1665 = vpow.pop %v1664
    %v1666 = vmul.f32 %v1662, 1.442695
    %v1667 = vpow.pop %v1666
    %v1668 = vmul.f32 %v1663, 1.442695
    %v1669 = vpow.pop %v1668
    %v1670 = vadd.f32 %v1665, 1.0
    %v1671 = vadd.f32 %v1667, 1.0
    %v1672 = vadd.f32 %v1669, 1.0
    %v1673 = vrcp.pop %v1670
    %v1674 = vmul.f32 1.0, %v1673
    %v1675 = vrcp.pop %v1671
    %v1676 = vmul.f32 1.0, %v1675
    %v1677 = vrcp.pop %v1672
    %v1678 = vmul.f32 1.0, %v1677
    %v1679 = vtanh.pop %v1660
    %v1680 = vmul.f32 %v1676, %v1568
    %v1681 = vmul.f32 %v1674, %v1679
    %v1682 = vadd.f32 %v1680, %v1681
    %v1683 = vtanh.pop %v1682
    %v1684 = vmul.f32 %v1678, %v1683
    %p1685 = scmp.gt.s32.totalorder %s521, 7
    %s1686 = scalar_select %p1685, 1, 0
    %v1687 = vstv %s1686
    %vm1688 = vcmp.eq.s32.totalorder %v1687, 1
    %v1689 = vsel %vm1688, %v1684, %v1567
    %v1690 = vsel %vm1688, %v1682, %v1568
    %1691 = vst [vmem:[#allocation2] sm:$0xff] %v1689
    %1692 = vst [vmem:[#allocation3] sm:$0xff] %v1690
    // Predicated region
    $region38: #{tpu_custom_call.1} parent=1 // pred_check
      %p1693 = pneg %p47
    $region39: #{tpu_custom_call.1} parent=1 // pred_check_branch
      %1695 = sbr.rel (%p1693) target = $region41
    $region40: #{tpu_custom_call.1} parent=1 // pred_region
      %v1696 = vld [vmem:[#allocation2] sm:$0xff]
      %v1697 = vpack.c.bf16 %v1696, %v1696
      %v1698 = vld [vmem:[#allocation7] sm:$0xf]
      %v1699 = vld [vmem:[#allocation7 + $0x4] sm:$0xf]
      %v1700 = vld [vmem:[#allocation7 + $0x8] sm:$0xf]
      %v1701 = vld [vmem:[#allocation7 + $0xc] sm:$0xf]
      %v1702 = vld [vmem:[#allocation7 + $0x10] sm:$0xf]
      %v1703 = vld [vmem:[#allocation7 + $0x14] sm:$0xf]
      %v1704 = vld [vmem:[#allocation7 + $0x18] sm:$0xf]
      %v1705 = vld [vmem:[#allocation7 + $0x1c] sm:$0xf]
      %v1706 = vld [vmem:[#allocation7 + $0x20] sm:$0xf]
      %v1707 = vld [vmem:[#allocation7 + $0x24] sm:$0xf]
      %v1708 = vld [vmem:[#allocation7 + $0x28] sm:$0xf]
      %v1709 = vld [vmem:[#allocation7 + $0x2c] sm:$0xf]
      %v1710 = vld [vmem:[#allocation7 + $0x30] sm:$0xf]
      %v1711 = vld [vmem:[#allocation7 + $0x34] sm:$0xf]
      %v1712 = vld [vmem:[#allocation7 + $0x38] sm:$0xf]
      %v1713 = vld [vmem:[#allocation7 + $0x3c] sm:$0xf]
      %v1714 = vld [vmem:[%s3] sm:$0x1]
      %v1716 = vlaneseq
      %v1717 = vshrl.u32 %v1716, 7
      %v1718 = vsub.s32 0, %v1717
      %v1719 = vrot.slane %v1714, %v1718
      %v1737 = vunpack.c.l.b16 %v1698
      %v1738 = vunpack.c.l.b16 %v1699
      %v1739 = vunpack.c.l.b16 %v1700
      %v1740 = vunpack.c.l.b16 %v1701
      %v1741 = vunpack.c.l.b16 %v1702
      %v1742 = vunpack.c.l.b16 %v1703
      %v1743 = vunpack.c.l.b16 %v1704
      %v1744 = vunpack.c.l.b16 %v1705
      %v1745 = vunpack.c.l.b16 %v1706
      %v1746 = vunpack.c.l.b16 %v1707
      %v1747 = vunpack.c.l.b16 %v1708
      %v1748 = vunpack.c.l.b16 %v1709
      %v1749 = vunpack.c.l.b16 %v1710
      %v1750 = vunpack.c.l.b16 %v1711
      %v1751 = vunpack.c.l.b16 %v1712
      %v1752 = vunpack.c.l.b16 %v1713
      %v1753 = vpack.c.b16 %v1738, %v1737
      %v1754 = vpack.c.b16 %v1740, %v1739
      %v1755 = vpack.c.b16 %v1742, %v1741
      %v1756 = vpack.c.b16 %v1744, %v1743
      %v1757 = vpack.c.b16 %v1746, %v1745
      %v1758 = vpack.c.b16 %v1748, %v1747
      %v1759 = vpack.c.b16 %v1750, %v1749
      %v1760 = vpack.c.b16 %v1752, %v1751
      %1769 = vmatprep.subr.bf16.mxu0 0
      %1770 = vmatpush1.bf16.msra.mxu0 %v1760
      %1771 = vmatprep.subr.bf16.mxu0 0
      %1772 = vmatpush1.bf16.msra.mxu0 %v1759
      %1773 = vmatprep.subr.bf16.mxu0 0
      %1774 = vmatpush1.bf16.msra.mxu0 %v1758
      %1775 = vmatprep.subr.bf16.mxu0 0
      %1776 = vmatpush1.bf16.msra.mxu0 %v1757
      %1777 = vmatprep.subr.bf16.mxu0 0
      %1778 = vmatpush1.bf16.msra.mxu0 %v1756
      %1779 = vmatprep.subr.bf16.mxu0 0
      %1780 = vmatpush1.bf16.msra.mxu0 %v1755
      %1781 = vmatprep.subr.bf16.mxu0 0
      %1782 = vmatpush1.bf16.msra.mxu0 %v1754
      %1783 = vmatprep.subr.bf16.mxu0 0
      %1784 = vmatpush1.bf16.msra.mxu0 %v1753
      %1785 = vmatprep.subr.bf16.mxu0 0
      %1786 = vmatpush2.bf16.msra.mxu0 0
      %1787 = vmatprep.subr.bf16.mxu0 0
      %1788 = vmatpush2.bf16.msra.mxu0 0
      %1789 = vmatprep.subr.bf16.mxu0 0
      %1790 = vmatpush2.bf16.msra.mxu0 0
      %1791 = vmatprep.subr.bf16.mxu0 0
      %1792 = vmatpush2.bf16.msra.mxu0 0
      %1793 = vmatprep.subr.bf16.mxu0 0
      %1794 = vmatpush2.bf16.msra.mxu0 0
      %1795 = vmatprep.subr.bf16.mxu0 0
      %1796 = vmatpush2.bf16.msra.mxu0 0
      %1797 = vmatprep.subr.bf16.mxu0 0
      %1798 = vmatpush2.bf16.msra.mxu0 0
      %1799 = vmatprep.subr.bf16.mxu0 0
      %1800 = vmatpush2.bf16.msra.mxu0 0
      %1801 = vmatprep.mubr.bf16.mxu0 0
      %1802 = vmatmul.mubr.bf16.gmra.mxu0 %v1697
      %v1803 = vpop.f32.mrf.mxu0
      %v1804 = vadd.f32 %v1719, %v1803
      %v1805 = vpop.f32.mrf.mxu0
      %v1806 = vpop.f32.mrf.mxu0
      %v1807 = vpop.f32.mrf.mxu0
      %1808 = vdwg.mxu0
      %1809 = vst [vmem:[#allocation16] sm:$0xff] %v1804
    $region41: #{tpu_custom_call.1} parent=1 // pred_fallthru
      _
    // Predicated region
    $region42: #{tpu_custom_call.1} parent=1 // pred_check
      _
    $region43: #{tpu_custom_call.1} parent=1 // pred_check_branch
      %1811 = sbr.rel (0) target = $region45
    $region44: #{tpu_custom_call.1} parent=1 // pred_region
      %s1813 = ssub.s32 128, 128
      %1814 = vsyncadd [#allocation13], %s1813
      %s1816 = sshll.u32 [#allocation16], 4
      %s1817 = int_to_ptr.vmem [resolvable:$true] %s1816
      %1819 = dma.vmem_to_hbm [thread:$0]  %s1817, 128, %s7, [#allocation13]
    $region45: #{tpu_custom_call.1} parent=1 // pred_fallthru
      _
    // Predicated region
    $region46: #{tpu_custom_call.1} parent=1 // pred_check
      _
    $region47: #{tpu_custom_call.1} parent=1 // pred_check_branch
      %1821 = sbr.rel (0) target = $region49
    $region48: #{tpu_custom_call.1} parent=1 // pred_region
      %1822 = dma.done [#allocation13], 128
    $region49: #{tpu_custom_call.1} parent=1 // pred_fallthru
      _
    %1823 = vsyncpa [#allocation12], 1
    %1824 = vsyncpa [#allocation15], 1
    %1825 = vsyncpa [#allocation13], 1
  %1826 = vsyncmov [#allocation8]
  %s1827 = vpop.sfrf %1826
  %p1828 = scmp.eq.s32.totalorder %s1827, 0
  %p1829 = pneg %p1828
  %1831 = shalt.err (%p1829)
  %s1832 = scalar_lea.sflag [#allocation8], 1
  %1833 = vsyncmov %s1832
  %s1834 = vpop.sfrf %1833
  %p1835 = scmp.eq.s32.totalorder %s1834, 0
  %p1836 = pneg %p1835
  %1838 = shalt.err (%p1836)
  %s1839 = scalar_lea.sflag [#allocation8], 2
  %1840 = vsyncmov %s1839
  %s1841 = vpop.sfrf %1840
  %p1842 = scmp.eq.s32.totalorder %s1841, 0
  %p1843 = pneg %p1842
  %1845 = shalt.err (%p1843)

</llo_original>
